<compile_context>
chip_gen: v7x
topology: tpu7x:2x2x1
jax: 0.10.0
libtpu: 0.0.40
codegen_flags: <defaults>
</compile_context>

<pallas_src>
import math
import functools

import jax
import jax.numpy as jnp
import numpy as np
from jax.experimental import pallas as pl
from jax.experimental.pallas import tpu as pltpu


# ----------------------------- kernel helpers -----------------------------

def _layer_norm(x, gamma, beta, eps):
    mean = jnp.mean(x, axis=-1, keepdims=True)
    var = jnp.mean((x - mean) ** 2, axis=-1, keepdims=True)
    return (x - mean) * jax.lax.rsqrt(var + eps) * gamma + beta


def _gelu(x):
    # x * 0.5 * (1 + erf(x / sqrt(2)))  -- exact same formula as the torch ref.
    return x * 0.5 * (1.0 + jax.lax.erf(x / math.sqrt(2.0)))


# ------------------------------ Pallas kernel ------------------------------

def bert_layer_kernel(hsq_ref, hsf_ref, mask_ref,
                      wq_ref, bq_ref, wk_ref, bk_ref, wv_ref, bv_ref,
                      wo_ref, bo_ref, ln1g_ref, ln1b_ref,
                      wi_ref, bi_ref, wo2_ref, bo2_ref, ln2g_ref, ln2b_ref,
                      out_ref, k_scr, v_scr, *, num_heads, head_size, eps):
    f32 = jnp.float32
    bf16 = jnp.bfloat16

    hs_q = hsq_ref[0]          # [TQ, H] f32 -- query tile (residual path)
    mask = mask_ref[0, 0]      # [S]     f32 -- additive key mask

    TQ = hs_q.shape[0]
    S = k_scr.shape[0]
    H = num_heads * head_size

    # --- K/V projections: computed once per batch element (first query tile),
    # --- cached in bf16 VMEM scratch and reused by all later query tiles.
    @pl.when(pl.program_id(1) == 0)
    def _():
        hs_f_b = hsf_ref[0].astype(bf16)                         # [S, H]
        k = jnp.dot(hs_f_b, wk_ref[...], preferred_element_type=f32) + bk_ref[...]
        v = jnp.dot(hs_f_b, wv_ref[...], preferred_element_type=f32) + bv_ref[...]
        k_scr[...] = k.astype(bf16)
        v_scr[...] = v.astype(bf16)

    # --- Query projection for this tile (bf16 operands, f32 MXU accumulation).
    hs_q_b = hs_q.astype(bf16)
    q = jnp.dot(hs_q_b, wq_ref[...], preferred_element_type=f32) + bq_ref[...]

    # --- Batched per-head attention (single dot_general with a head batch dim).
    qh = q.astype(bf16).reshape(TQ, num_heads, head_size)
    kh = k_scr[...].reshape(S, num_heads, head_size)
    vh = v_scr[...].reshape(S, num_heads, head_size)

    scale = 1.0 / math.sqrt(head_size)
    scores = jnp.einsum("qhd,khd->hqk", qh, kh,
                        preferred_element_type=f32) * scale      # [NH, TQ, S]
    scores = scores + mask[None, None, :]
    scores = scores - jnp.max(scores, axis=-1, keepdims=True)
    e = jnp.exp(scores)
    inv_den = pl.reciprocal(jnp.sum(e, axis=-1, keepdims=True), approx=True)
    probs = e * inv_den
    # TODO(synk): attention/hidden dropout omitted (identity in eval mode).
    ctx = jnp.einsum("hqk,khd->qhd", probs.astype(bf16), vh,
                     preferred_element_type=f32).reshape(TQ, H)   # [TQ, H]

    # --- Self-attention output projection + residual + LayerNorm (f32 math).
    attn = jnp.dot(ctx.astype(bf16), wo_ref[...],
                   preferred_element_type=f32) + bo_ref[...]
    attn = _layer_norm(attn + hs_q, ln1g_ref[...], ln1b_ref[...], eps)

    # --- Intermediate (GELU) + output FFN + residual + LayerNorm.
    inter = jnp.dot(attn.astype(bf16), wi_ref[...],
                    preferred_element_type=f32) + bi_ref[...]
    inter = _gelu(inter)
    ff = jnp.dot(inter.astype(bf16), wo2_ref[...],
                 preferred_element_type=f32) + bo2_ref[...]
    out = _layer_norm(ff + attn, ln2g_ref[...], ln2b_ref[...], eps)

    out_ref[0] = out


# ------------------------------ layer wrapper ------------------------------

def bert_layer(hidden, mask, p, *, num_heads, eps, q_tile=None):
    B, S, H = hidden.shape
    I = p["wi"].shape[1]
    head_size = H // num_heads

    TQ = S if q_tile is None else min(q_tile, S)
    assert S % TQ == 0, "sequence length must be a multiple of the query tile"
    n_q = S // TQ

    kernel = functools.partial(bert_layer_kernel,
                               num_heads=num_heads, head_size=head_size, eps=eps)

    def const(shape):
        # Constant block index across the whole grid: weights stay resident in
        # VMEM (no re-DMA per grid step).
        return pl.BlockSpec(shape, lambda b, qi: (0,) * len(shape))

    in_specs = [
        pl.BlockSpec((1, TQ, H), lambda b, qi: (b, qi, 0)),   # hidden (query tile)
        pl.BlockSpec((1, S, H), lambda b, qi: (b, 0, 0)),     # hidden (full, for K/V)
        pl.BlockSpec((1, 1, S), lambda b, qi: (b, 0, 0)),     # attention mask
        const((H, H)), const((1, H)),                         # query
        const((H, H)), const((1, H)),                         # key
        const((H, H)), const((1, H)),                         # value
        const((H, H)), const((1, H)),                         # attn output dense
        const((1, H)), const((1, H)),                         # LayerNorm 1
        const((H, I)), const((1, I)),                         # intermediate dense
        const((I, H)), const((1, H)),                         # output dense
        const((1, H)), const((1, H)),                         # LayerNorm 2
    ]
    return pl.pallas_call(
        kernel,
        out_shape=jax.ShapeDtypeStruct((B, S, H), jnp.float32),
        grid=(B, n_q),
        in_specs=in_specs,
        out_specs=pl.BlockSpec((1, TQ, H), lambda b, qi: (b, qi, 0)),
        scratch_shapes=[pltpu.VMEM((S, H), jnp.bfloat16),     # cached K (per batch)
                        pltpu.VMEM((S, H), jnp.bfloat16)],    # cached V (per batch)
        compiler_params=pltpu.CompilerParams(
            # qi axis is "arbitrary": K/V scratch carries state across q tiles.
            dimension_semantics=("parallel", "arbitrary"),
            vmem_limit_bytes=48 * 1024 * 1024),
    )(hidden, hidden, mask,
      p["wq"], p["bq"], p["wk"], p["bk"], p["wv"], p["bv"],
      p["wo"], p["bo"], p["ln1_g"], p["ln1_b"],
      p["wi"], p["bi"], p["wo2"], p["bo2"], p["ln2_g"], p["ln2_b"])


def bert_encoder(hidden, mask, layer_params, *, num_heads, eps, q_tile=None,
                 output_hidden_states=False, output_attentions=False):
    # TODO(synk): output_attentions would require a second kernel output; not wired.
    all_hidden = ()
    for p in layer_params:
        if output_hidden_states:
            all_hidden += (hidden,)
        hidden = bert_layer(hidden, mask, p, num_heads=num_heads, eps=eps,
                            q_tile=q_tile)
    outputs = (hidden,)
    if output_hidden_states:
        outputs += (all_hidden,)
    return outputs


# ------------------------- pure-JAX reference check -------------------------

def ref_layer(hs, mask4d, p, num_heads, eps):
    B, S, H = hs.shape
    dh = H // num_heads

    def ln(x, g, b):
        m = x.mean(-1, keepdims=True)
        v = ((x - m) ** 2).mean(-1, keepdims=True)
        return (x - m) / jnp.sqrt(v + eps) * g[0] + b[0]

    f32 = jnp.float32
    wq, wk, wv = p["wq"].astype(f32), p["wk"].astype(f32), p["wv"].astype(f32)
    wo, wi, wo2 = p["wo"].astype(f32), p["wi"].astype(f32), p["wo2"].astype(f32)

    q = hs @ wq + p["bq"][0]
    k = hs @ wk + p["bk"][0]
    v = hs @ wv + p["bv"][0]
    q = q.reshape(B, S, num_heads, dh).transpose(0, 2, 1, 3)
    k = k.reshape(B, S, num_heads, dh).transpose(0, 2, 1, 3)
    v = v.reshape(B, S, num_heads, dh).transpose(0, 2, 1, 3)
    s = jnp.einsum("bhqd,bhkd->bhqk", q, k) / math.sqrt(dh)
    s = s + mask4d                                   # [B,1,1,S] broadcast
    probs = jax.nn.softmax(s, axis=-1)
    ctx = jnp.einsum("bhqk,bhkd->bhqd", probs, v).transpose(0, 2, 1, 3).reshape(B, S, H)
    attn = ln(ctx @ wo + p["bo"][0] + hs, p["ln1_g"], p["ln1_b"])
    inter = attn @ wi + p["bi"][0]
    inter = inter * 0.5 * (1.0 + jax.lax.erf(inter / math.sqrt(2.0)))
    out = ln(inter @ wo2 + p["bo2"][0] + attn, p["ln2_g"], p["ln2_b"])
    return out


# ----------------------------------- main -----------------------------------

def make_layer_params(key, H, I):
    ks = jax.random.split(key, 6)
    scale = 0.02
    bf16 = jnp.bfloat16
    return {
        # Matmul weights stored in bf16 (MXU operands / halved HBM+VMEM traffic).
        "wq": (scale * jax.random.normal(ks[0], (H, H), jnp.float32)).astype(bf16),
        "bq": jnp.zeros((1, H), jnp.float32),
        "wk": (scale * jax.random.normal(ks[1], (H, H), jnp.float32)).astype(bf16),
        "bk": jnp.zeros((1, H), jnp.float32),
        "wv": (scale * jax.random.normal(ks[2], (H, H), jnp.float32)).astype(bf16),
        "bv": jnp.zeros((1, H), jnp.float32),
        "wo": (scale * jax.random.normal(ks[3], (H, H), jnp.float32)).astype(bf16),
        "bo": jnp.zeros((1, H), jnp.float32),
        "ln1_g": jnp.ones((1, H), jnp.float32),
        "ln1_b": jnp.zeros((1, H), jnp.float32),
        "wi": (scale * jax.random.normal(ks[4], (H, I), jnp.float32)).astype(bf16),
        "bi": jnp.zeros((1, I), jnp.float32),
        "wo2": (scale * jax.random.normal(ks[5], (I, H), jnp.float32)).astype(bf16),
        "bo2": jnp.zeros((1, H), jnp.float32),
        "ln2_g": jnp.ones((1, H), jnp.float32),
        "ln2_b": jnp.zeros((1, H), jnp.float32),
    }


if __name__ == "__main__":
    B, S, H, NH, I, L = 2, 16, 32, 4, 64, 2
    TQ = 8            # query-tile size -> grid = (B, S // TQ) = (2, 2)
    EPS = 1e-12

    key = jax.random.PRNGKey(0)
    k_hs, k_mask, *k_layers = jax.random.split(key, 2 + L)

    hidden = jax.random.normal(k_hs, (B, S, H), jnp.float32)
    # additive mask: 0 for attended positions, -10000 for masked
    # (last 3 tokens of batch element 1 are masked out)
    keep = jnp.ones((B, S), jnp.float32).at[1, -3:].set(0.0)
    mask = ((1.0 - keep) * -10000.0).reshape(B, 1, S)

    params = [make_layer_params(k, H, I) for k in k_layers]

    out = bert_encoder(hidden, mask, params, num_heads=NH, eps=EPS, q_tile=TQ,
                       output_hidden_states=True)
    final_hidden = jax.block_until_ready(out[0])

    # Correctness check against a pure-JAX f32 reference (kernel uses bf16 MXU
    # operands + approx reciprocal, so tolerance is loosened accordingly).
    ref = hidden
    mask4d = mask.reshape(B, 1, 1, S)
    for p in params:
        ref = ref_layer(ref, mask4d, p, NH, EPS)
    np.testing.assert_allclose(np.asarray(final_hidden), np.asarray(ref),
                               rtol=5e-2, atol=5e-2)

    print("KERNEL_OK")
</pallas_src>

<mosaic_0001>
module attributes {stable_mosaic.version = 11 : i64} {
  func.func @bert_layer_kernel(%arg0: i32, %arg1: i32, %arg2: memref<1x8x32xf32, #tpu.memory_space<vmem>>, %arg3: memref<1x16x32xf32, #tpu.memory_space<vmem>>, %arg4: memref<1x1x16xf32, #tpu.memory_space<vmem>>, %arg5: memref<32x32xbf16, #tpu.memory_space<vmem>>, %arg6: memref<1x32xf32, #tpu.memory_space<vmem>>, %arg7: memref<32x32xbf16, #tpu.memory_space<vmem>>, %arg8: memref<1x32xf32, #tpu.memory_space<vmem>>, %arg9: memref<32x32xbf16, #tpu.memory_space<vmem>>, %arg10: memref<1x32xf32, #tpu.memory_space<vmem>>, %arg11: memref<32x32xbf16, #tpu.memory_space<vmem>>, %arg12: memref<1x32xf32, #tpu.memory_space<vmem>>, %arg13: memref<1x32xf32, #tpu.memory_space<vmem>>, %arg14: memref<1x32xf32, #tpu.memory_space<vmem>>, %arg15: memref<32x64xbf16, #tpu.memory_space<vmem>>, %arg16: memref<1x64xf32, #tpu.memory_space<vmem>>, %arg17: memref<64x32xbf16, #tpu.memory_space<vmem>>, %arg18: memref<1x32xf32, #tpu.memory_space<vmem>>, %arg19: memref<1x32xf32, #tpu.memory_space<vmem>>, %arg20: memref<1x32xf32, #tpu.memory_space<vmem>>, %arg21: memref<1x8x32xf32, #tpu.memory_space<vmem>>, %arg22: memref<16x32xbf16, #tpu.memory_space<vmem>>, %arg23: memref<16x32xbf16, #tpu.memory_space<vmem>>) attributes {dimension_semantics = [#tpu.dimension_semantics<parallel>, #tpu.dimension_semantics<arbitrary>], iteration_bounds = array<i64: 2, 2>, scalar_prefetch = 0 : i64, scratch_operands = 2 : i64, tpu.core_type = #tpu.core_type<tc>, window_params = [{transform_indices = @transform_0, window_bounds = array<i64: 1, 8, 32>}, {transform_indices = @transform_1, window_bounds = array<i64: 1, 16, 32>}, {transform_indices = @transform_2, window_bounds = array<i64: 1, 1, 16>}, {pipeline_mode = #tpu.pipeline_mode<synchronous>, transform_indices = @transform_3, window_bounds = array<i64: 32, 32>}, {pipeline_mode = #tpu.pipeline_mode<synchronous>, transform_indices = @transform_4, window_bounds = array<i64: 1, 32>}, {pipeline_mode = #tpu.pipeline_mode<synchronous>, transform_indices = @transform_5, window_bounds = array<i64: 32, 32>}, {pipeline_mode = #tpu.pipeline_mode<synchronous>, transform_indices = @transform_6, window_bounds = array<i64: 1, 32>}, {pipeline_mode = #tpu.pipeline_mode<synchronous>, transform_indices = @transform_7, window_bounds = array<i64: 32, 32>}, {pipeline_mode = #tpu.pipeline_mode<synchronous>, transform_indices = @transform_8, window_bounds = array<i64: 1, 32>}, {pipeline_mode = #tpu.pipeline_mode<synchronous>, transform_indices = @transform_9, window_bounds = array<i64: 32, 32>}, {pipeline_mode = #tpu.pipeline_mode<synchronous>, transform_indices = @transform_10, window_bounds = array<i64: 1, 32>}, {pipeline_mode = #tpu.pipeline_mode<synchronous>, transform_indices = @transform_11, window_bounds = array<i64: 1, 32>}, {pipeline_mode = #tpu.pipeline_mode<synchronous>, transform_indices = @transform_12, window_bounds = array<i64: 1, 32>}, {pipeline_mode = #tpu.pipeline_mode<synchronous>, transform_indices = @transform_13, window_bounds = array<i64: 32, 64>}, {pipeline_mode = #tpu.pipeline_mode<synchronous>, transform_indices = @transform_14, window_bounds = array<i64: 1, 64>}, {pipeline_mode = #tpu.pipeline_mode<synchronous>, transform_indices = @transform_15, window_bounds = array<i64: 64, 32>}, {pipeline_mode = #tpu.pipeline_mode<synchronous>, transform_indices = @transform_16, window_bounds = array<i64: 1, 32>}, {pipeline_mode = #tpu.pipeline_mode<synchronous>, transform_indices = @transform_17, window_bounds = array<i64: 1, 32>}, {pipeline_mode = #tpu.pipeline_mode<synchronous>, transform_indices = @transform_18, window_bounds = array<i64: 1, 32>}, {transform_indices = @transform_19, window_bounds = array<i64: 1, 8, 32>}]} {
    %c0 = arith.constant 0 : index
    %c0_0 = arith.constant 0 : index
    %c0_1 = arith.constant 0 : index
    %0 = vector.load %arg2[%c0, %c0_0, %c0_1] : memref<1x8x32xf32, #tpu.memory_space<vmem>>, vector<1x8x32xf32>
    %1 = vector.shape_cast %0 : vector<1x8x32xf32> to vector<8x32xf32>
    %c0_2 = arith.constant 0 : index
    %c0_3 = arith.constant 0 : index
    %c0_4 = arith.constant 0 : index
    %2 = vector.load %arg4[%c0_2, %c0_3, %c0_4] : memref<1x1x16xf32, #tpu.memory_space<vmem>>, vector<1x1x16xf32>
    %3 = vector.shape_cast %2 : vector<1x1x16xf32> to vector<16xf32>
    %c0_i32 = arith.constant 0 : i32
    %4 = arith.cmpi eq, %arg1, %c0_i32 : i32
    %5 = arith.extui %4 : i1 to i32
    %c0_i32_5 = arith.constant 0 : i32
    %6 = arith.cmpi ne, %5, %c0_i32_5 : i32
    scf.if %6 {
      %c0_58 = arith.constant 0 : index
      %c0_59 = arith.constant 0 : index
      %c0_60 = arith.constant 0 : index
      %118 = vector.load %arg3[%c0_58, %c0_59, %c0_60] : memref<1x16x32xf32, #tpu.memory_space<vmem>>, vector<1x16x32xf32>
      %119 = vector.shape_cast %118 : vector<1x16x32xf32> to vector<16x32xf32>
      %120 = arith.truncf %119 : vector<16x32xf32> to vector<16x32xbf16>
      %c0_61 = arith.constant 0 : index
      %c0_62 = arith.constant 0 : index
      %121 = vector.load %arg7[%c0_61, %c0_62] : memref<32x32xbf16, #tpu.memory_space<vmem>>, vector<32x32xbf16>
      %cst_63 = arith.constant dense<0.000000e+00> : vector<16x32xf32>
      %122 = tpu.matmul %120, %121, %cst_63 {dimension_numbers = #tpu.dot_dimension_numbers<[1], [0], [0], [1], [0, 0, 1, 1], [], []>} : vector<16x32xbf16>, vector<32x32xbf16>, vector<16x32xf32> -> vector<16x32xf32>
      %c0_64 = arith.constant 0 : index
      %c0_65 = arith.constant 0 : index
      %123 = vector.load %arg8[%c0_64, %c0_65] : memref<1x32xf32, #tpu.memory_space<vmem>>, vector<1x32xf32>
      %124 = vector.broadcast %123 : vector<1x32xf32> to vector<16x32xf32>
      %125 = arith.addf %122, %124 : vector<16x32xf32>
      %c0_66 = arith.constant 0 : index
      %c0_67 = arith.constant 0 : index
      %126 = vector.load %arg9[%c0_66, %c0_67] : memref<32x32xbf16, #tpu.memory_space<vmem>>, vector<32x32xbf16>
      %cst_68 = arith.constant dense<0.000000e+00> : vector<16x32xf32>
      %127 = tpu.matmul %120, %126, %cst_68 {dimension_numbers = #tpu.dot_dimension_numbers<[1], [0], [0], [1], [0, 0, 1, 1], [], []>} : vector<16x32xbf16>, vector<32x32xbf16>, vector<16x32xf32> -> vector<16x32xf32>
      %c0_69 = arith.constant 0 : index
      %c0_70 = arith.constant 0 : index
      %128 = vector.load %arg10[%c0_69, %c0_70] : memref<1x32xf32, #tpu.memory_space<vmem>>, vector<1x32xf32>
      %129 = vector.broadcast %128 : vector<1x32xf32> to vector<16x32xf32>
      %130 = arith.addf %127, %129 : vector<16x32xf32>
      %131 = arith.truncf %125 : vector<16x32xf32> to vector<16x32xbf16>
      %c0_71 = arith.constant 0 : index
      %c0_72 = arith.constant 0 : index
      %132 = vector.load %arg22[%c0_71, %c0_72] : memref<16x32xbf16, #tpu.memory_space<vmem>>, vector<16x32xbf16>
      tpu.vector_store %arg22[%c0_71, %c0_72], %131 {strides = array<i32>} : memref<16x32xbf16, #tpu.memory_space<vmem>>, vector<16x32xbf16>,
      %133 = arith.truncf %130 : vector<16x32xf32> to vector<16x32xbf16>
      %c0_73 = arith.constant 0 : index
      %c0_74 = arith.constant 0 : index
      %134 = vector.load %arg23[%c0_73, %c0_74] : memref<16x32xbf16, #tpu.memory_space<vmem>>, vector<16x32xbf16>
      tpu.vector_store %arg23[%c0_73, %c0_74], %133 {strides = array<i32>} : memref<16x32xbf16, #tpu.memory_space<vmem>>, vector<16x32xbf16>,
    } else {
    }
    %7 = arith.truncf %1 : vector<8x32xf32> to vector<8x32xbf16>
    %c0_6 = arith.constant 0 : index
    %c0_7 = arith.constant 0 : index
    %8 = vector.load %arg5[%c0_6, %c0_7] : memref<32x32xbf16, #tpu.memory_space<vmem>>, vector<32x32xbf16>
    %cst = arith.constant dense<0.000000e+00> : vector<8x32xf32>
    %9 = tpu.matmul %7, %8, %cst {dimension_numbers = #tpu.dot_dimension_numbers<[1], [0], [0], [1], [0, 0, 1, 1], [], []>} : vector<8x32xbf16>, vector<32x32xbf16>, vector<8x32xf32> -> vector<8x32xf32>
    %c0_8 = arith.constant 0 : index
    %c0_9 = arith.constant 0 : index
    %10 = vector.load %arg6[%c0_8, %c0_9] : memref<1x32xf32, #tpu.memory_space<vmem>>, vector<1x32xf32>
    %11 = vector.broadcast %10 : vector<1x32xf32> to vector<8x32xf32>
    %12 = arith.addf %9, %11 : vector<8x32xf32>
    %13 = arith.truncf %12 : vector<8x32xf32> to vector<8x32xbf16>
    %14 = vector.shape_cast %13 : vector<8x32xbf16> to vector<8x4x8xbf16>
    %c0_10 = arith.constant 0 : index
    %c0_11 = arith.constant 0 : index
    %15 = vector.load %arg22[%c0_10, %c0_11] : memref<16x32xbf16, #tpu.memory_space<vmem>>, vector<16x32xbf16>
    %16 = vector.shape_cast %15 : vector<16x32xbf16> to vector<16x4x8xbf16>
    %c0_12 = arith.constant 0 : index
    %c0_13 = arith.constant 0 : index
    %17 = vector.load %arg23[%c0_12, %c0_13] : memref<16x32xbf16, #tpu.memory_space<vmem>>, vector<16x32xbf16>
    %18 = vector.shape_cast %17 : vector<16x32xbf16> to vector<16x4x8xbf16>
    "tpu.trace_start"() <{level = 10 : i32, message = "qhd,khd->hqk"}> : () -> ()
    %cst_14 = arith.constant dense<0.000000e+00> : vector<4x8x16xf32>
    %19 = tpu.matmul %14, %16, %cst_14 {dimension_numbers = #tpu.dot_dimension_numbers<[2], [2], [0], [0], [0, 1, 0, 0, 1, 0], [1], [1]>} : vector<8x4x8xbf16>, vector<16x4x8xbf16>, vector<4x8x16xf32> -> vector<4x8x16xf32>
    "tpu.trace_stop"() : () -> ()
    %cst_15 = arith.constant 0.353553385 : f32
    %20 = vector.broadcast %cst_15 : f32 to vector<4x8x16xf32>
    %21 = arith.mulf %19, %20 : vector<4x8x16xf32>
    %22 = vector.shape_cast %3 : vector<16xf32> to vector<1x1x16xf32>
    %23 = vector.broadcast %22 : vector<1x1x16xf32> to vector<4x8x16xf32>
    %24 = arith.addf %21, %23 : vector<4x8x16xf32>
    %cst_16 = arith.constant dense<0xFF800000> : vector<4x8xf32>
    %25 = vector.multi_reduction <maximumf>, %24, %cst_16 [2] : vector<4x8x16xf32> to vector<4x8xf32>
    %26 = vector.shape_cast %25 : vector<4x8xf32> to vector<4x8x1xf32>
    %27 = vector.broadcast %26 : vector<4x8x1xf32> to vector<4x8x16xf32>
    %28 = arith.subf %24, %27 : vector<4x8x16xf32>
    %29 = math.exp %28 : vector<4x8x16xf32>
    %cst_17 = arith.constant dense<0.000000e+00> : vector<4x8xf32>
    %30 = vector.multi_reduction <add>, %29, %cst_17 [2] : vector<4x8x16xf32> to vector<4x8xf32>
    %31 = vector.shape_cast %30 : vector<4x8xf32> to vector<4x8x1xf32>
    %32 = tpu.reciprocal %31 {approx = true} : vector<4x8x1xf32> -> vector<4x8x1xf32>
    %33 = vector.broadcast %32 : vector<4x8x1xf32> to vector<4x8x16xf32>
    %34 = arith.mulf %29, %33 : vector<4x8x16xf32>
    %35 = arith.truncf %34 : vector<4x8x16xf32> to vector<4x8x16xbf16>
    "tpu.trace_start"() <{level = 10 : i32, message = "hqk,khd->qhd"}> : () -> ()
    %cst_18 = arith.constant dense<0.000000e+00> : vector<4x8x8xf32>
    %36 = tpu.matmul %18, %35, %cst_18 {dimension_numbers = #tpu.dot_dimension_numbers<[0], [2], [2], [1], [0, 1, 0, 2, 1, 1], [1], [0]>} : vector<16x4x8xbf16>, vector<4x8x16xbf16>, vector<4x8x8xf32> -> vector<4x8x8xf32>
    %37 = tpu.transpose %36, [2, 0, 1] : vector<4x8x8xf32> -> vector<8x4x8xf32>
    "tpu.trace_stop"() : () -> ()
    %38 = vector.shape_cast %37 : vector<8x4x8xf32> to vector<8x32xf32>
    %39 = arith.truncf %38 : vector<8x32xf32> to vector<8x32xbf16>
    %c0_19 = arith.constant 0 : index
    %c0_20 = arith.constant 0 : index
    %40 = vector.load %arg11[%c0_19, %c0_20] : memref<32x32xbf16, #tpu.memory_space<vmem>>, vector<32x32xbf16>
    %cst_21 = arith.constant dense<0.000000e+00> : vector<8x32xf32>
    %41 = tpu.matmul %39, %40, %cst_21 {dimension_numbers = #tpu.dot_dimension_numbers<[1], [0], [0], [1], [0, 0, 1, 1], [], []>} : vector<8x32xbf16>, vector<32x32xbf16>, vector<8x32xf32> -> vector<8x32xf32>
    %c0_22 = arith.constant 0 : index
    %c0_23 = arith.constant 0 : index
    %42 = vector.load %arg12[%c0_22, %c0_23] : memref<1x32xf32, #tpu.memory_space<vmem>>, vector<1x32xf32>
    %43 = vector.broadcast %42 : vector<1x32xf32> to vector<8x32xf32>
    %44 = arith.addf %41, %43 : vector<8x32xf32>
    %45 = arith.addf %44, %1 : vector<8x32xf32>
    %c0_24 = arith.constant 0 : index
    %c0_25 = arith.constant 0 : index
    %46 = vector.load %arg13[%c0_24, %c0_25] : memref<1x32xf32, #tpu.memory_space<vmem>>, vector<1x32xf32>
    %c0_26 = arith.constant 0 : index
    %c0_27 = arith.constant 0 : index
    %47 = vector.load %arg14[%c0_26, %c0_27] : memref<1x32xf32, #tpu.memory_space<vmem>>, vector<1x32xf32>
    %cst_28 = arith.constant dense<0.000000e+00> : vector<8xf32>
    %48 = vector.multi_reduction <add>, %45, %cst_28 [1] : vector<8x32xf32> to vector<8xf32>
    %49 = vector.shape_cast %48 : vector<8xf32> to vector<8x1xf32>
    %cst_29 = arith.constant 3.200000e+01 : f32
    %50 = vector.broadcast %cst_29 : f32 to vector<8x1xf32>
    %51 = arith.divf %49, %50 : vector<8x1xf32>
    %52 = vector.broadcast %51 : vector<8x1xf32> to vector<8x32xf32>
    %53 = arith.subf %45, %52 : vector<8x32xf32>
    %54 = arith.mulf %53, %53 : vector<8x32xf32>
    %cst_30 = arith.constant dense<0.000000e+00> : vector<8xf32>
    %55 = vector.multi_reduction <add>, %54, %cst_30 [1] : vector<8x32xf32> to vector<8xf32>
    %56 = vector.shape_cast %55 : vector<8xf32> to vector<8x1xf32>
    %cst_31 = arith.constant 3.200000e+01 : f32
    %57 = vector.broadcast %cst_31 : f32 to vector<8x1xf32>
    %58 = arith.divf %56, %57 : vector<8x1xf32>
    %59 = vector.broadcast %51 : vector<8x1xf32> to vector<8x32xf32>
    %60 = arith.subf %45, %59 : vector<8x32xf32>
    %cst_32 = arith.constant 9.99999996E-13 : f32
    %61 = vector.broadcast %cst_32 : f32 to vector<8x1xf32>
    %62 = arith.addf %58, %61 : vector<8x1xf32>
    %63 = math.rsqrt %62 : vector<8x1xf32>
    %64 = vector.broadcast %63 : vector<8x1xf32> to vector<8x32xf32>
    %65 = arith.mulf %60, %64 : vector<8x32xf32>
    %66 = vector.broadcast %46 : vector<1x32xf32> to vector<8x32xf32>
    %67 = arith.mulf %65, %66 : vector<8x32xf32>
    %68 = vector.broadcast %47 : vector<1x32xf32> to vector<8x32xf32>
    %69 = arith.addf %67, %68 : vector<8x32xf32>
    %70 = arith.truncf %69 : vector<8x32xf32> to vector<8x32xbf16>
    %c0_33 = arith.constant 0 : index
    %c0_34 = arith.constant 0 : index
    %71 = vector.load %arg15[%c0_33, %c0_34] : memref<32x64xbf16, #tpu.memory_space<vmem>>, vector<32x64xbf16>
    %cst_35 = arith.constant dense<0.000000e+00> : vector<8x64xf32>
    %72 = tpu.matmul %70, %71, %cst_35 {dimension_numbers = #tpu.dot_dimension_numbers<[1], [0], [0], [1], [0, 0, 1, 1], [], []>} : vector<8x32xbf16>, vector<32x64xbf16>, vector<8x64xf32> -> vector<8x64xf32>
    %c0_36 = arith.constant 0 : index
    %c0_37 = arith.constant 0 : index
    %73 = vector.load %arg16[%c0_36, %c0_37] : memref<1x64xf32, #tpu.memory_space<vmem>>, vector<1x64xf32>
    %74 = vector.broadcast %73 : vector<1x64xf32> to vector<8x64xf32>
    %75 = arith.addf %72, %74 : vector<8x64xf32>
    %cst_38 = arith.constant 5.000000e-01 : f32
    %76 = vector.broadcast %cst_38 : f32 to vector<8x64xf32>
    %77 = arith.mulf %75, %76 : vector<8x64xf32>
    %cst_39 = arith.constant 1.41421354 : f32
    %78 = vector.broadcast %cst_39 : f32 to vector<8x64xf32>
    %79 = arith.divf %75, %78 : vector<8x64xf32>
    %80 = math.erf %79 : vector<8x64xf32>
    %cst_40 = arith.constant 1.000000e+00 : f32
    %81 = vector.broadcast %cst_40 : f32 to vector<8x64xf32>
    %82 = arith.addf %81, %80 : vector<8x64xf32>
    %83 = arith.mulf %77, %82 : vector<8x64xf32>
    %84 = arith.truncf %83 : vector<8x64xf32> to vector<8x64xbf16>
    %c0_41 = arith.constant 0 : index
    %c0_42 = arith.constant 0 : index
    %85 = vector.load %arg17[%c0_41, %c0_42] : memref<64x32xbf16, #tpu.memory_space<vmem>>, vector<64x32xbf16>
    %cst_43 = arith.constant dense<0.000000e+00> : vector<8x32xf32>
    %86 = tpu.matmul %84, %85, %cst_43 {dimension_numbers = #tpu.dot_dimension_numbers<[1], [0], [0], [1], [0, 0, 1, 1], [], []>} : vector<8x64xbf16>, vector<64x32xbf16>, vector<8x32xf32> -> vector<8x32xf32>
    %c0_44 = arith.constant 0 : index
    %c0_45 = arith.constant 0 : index
    %87 = vector.load %arg18[%c0_44, %c0_45] : memref<1x32xf32, #tpu.memory_space<vmem>>, vector<1x32xf32>
    %88 = vector.broadcast %87 : vector<1x32xf32> to vector<8x32xf32>
    %89 = arith.addf %86, %88 : vector<8x32xf32>
    %90 = arith.addf %89, %69 : vector<8x32xf32>
    %c0_46 = arith.constant 0 : index
    %c0_47 = arith.constant 0 : index
    %91 = vector.load %arg19[%c0_46, %c0_47] : memref<1x32xf32, #tpu.memory_space<vmem>>, vector<1x32xf32>
    %c0_48 = arith.constant 0 : index
    %c0_49 = arith.constant 0 : index
    %92 = vector.load %arg20[%c0_48, %c0_49] : memref<1x32xf32, #tpu.memory_space<vmem>>, vector<1x32xf32>
    %cst_50 = arith.constant dense<0.000000e+00> : vector<8xf32>
    %93 = vector.multi_reduction <add>, %90, %cst_50 [1] : vector<8x32xf32> to vector<8xf32>
    %94 = vector.shape_cast %93 : vector<8xf32> to vector<8x1xf32>
    %cst_51 = arith.constant 3.200000e+01 : f32
    %95 = vector.broadcast %cst_51 : f32 to vector<8x1xf32>
    %96 = arith.divf %94, %95 : vector<8x1xf32>
    %97 = vector.broadcast %96 : vector<8x1xf32> to vector<8x32xf32>
    %98 = arith.subf %90, %97 : vector<8x32xf32>
    %99 = arith.mulf %98, %98 : vector<8x32xf32>
    %cst_52 = arith.constant dense<0.000000e+00> : vector<8xf32>
    %100 = vector.multi_reduction <add>, %99, %cst_52 [1] : vector<8x32xf32> to vector<8xf32>
    %101 = vector.shape_cast %100 : vector<8xf32> to vector<8x1xf32>
    %cst_53 = arith.constant 3.200000e+01 : f32
    %102 = vector.broadcast %cst_53 : f32 to vector<8x1xf32>
    %103 = arith.divf %101, %102 : vector<8x1xf32>
    %104 = vector.broadcast %96 : vector<8x1xf32> to vector<8x32xf32>
    %105 = arith.subf %90, %104 : vector<8x32xf32>
    %cst_54 = arith.constant 9.99999996E-13 : f32
    %106 = vector.broadcast %cst_54 : f32 to vector<8x1xf32>
    %107 = arith.addf %103, %106 : vector<8x1xf32>
    %108 = math.rsqrt %107 : vector<8x1xf32>
    %109 = vector.broadcast %108 : vector<8x1xf32> to vector<8x32xf32>
    %110 = arith.mulf %105, %109 : vector<8x32xf32>
    %111 = vector.broadcast %91 : vector<1x32xf32> to vector<8x32xf32>
    %112 = arith.mulf %110, %111 : vector<8x32xf32>
    %113 = vector.broadcast %92 : vector<1x32xf32> to vector<8x32xf32>
    %114 = arith.addf %112, %113 : vector<8x32xf32>
    %c0_55 = arith.constant 0 : index
    %c0_56 = arith.constant 0 : index
    %c0_57 = arith.constant 0 : index
    %115 = vector.load %arg21[%c0_55, %c0_56, %c0_57] : memref<1x8x32xf32, #tpu.memory_space<vmem>>, vector<1x8x32xf32>
    %116 = vector.shape_cast %115 : vector<1x8x32xf32> to vector<8x32xf32>
    %117 = vector.shape_cast %114 : vector<8x32xf32> to vector<1x8x32xf32>
    tpu.vector_store %arg21[%c0_55, %c0_56, %c0_57], %117 {strides = array<i32>} : memref<1x8x32xf32, #tpu.memory_space<vmem>>, vector<1x8x32xf32>,
    return
  }
  func.func @transform_0(%arg0: i32, %arg1: i32) -> (i32, i32, i32) {
    %c0_i32 = arith.constant 0 : i32
    %c0_i32_0 = arith.constant 0 : i32
    return %arg0, %arg1, %c0_i32 : i32, i32, i32
  }
  func.func @transform_1(%arg0: i32, %arg1: i32) -> (i32, i32, i32) {
    %c0_i32 = arith.constant 0 : i32
    %c0_i32_0 = arith.constant 0 : i32
    %c0_i32_1 = arith.constant 0 : i32
    return %arg0, %c0_i32, %c0_i32_0 : i32, i32, i32
  }
  func.func @transform_2(%arg0: i32, %arg1: i32) -> (i32, i32, i32) {
    %c0_i32 = arith.constant 0 : i32
    %c0_i32_0 = arith.constant 0 : i32
    %c0_i32_1 = arith.constant 0 : i32
    return %arg0, %c0_i32, %c0_i32_0 : i32, i32, i32
  }
  func.func @transform_3(%arg0: i32, %arg1: i32) -> (i32, i32) {
    %c0_i32 = arith.constant 0 : i32
    %c0_i32_0 = arith.constant 0 : i32
    %c0_i32_1 = arith.constant 0 : i32
    return %c0_i32, %c0_i32_0 : i32, i32
  }
  func.func @transform_4(%arg0: i32, %arg1: i32) -> (i32, i32) {
    %c0_i32 = arith.constant 0 : i32
    %c0_i32_0 = arith.constant 0 : i32
    %c0_i32_1 = arith.constant 0 : i32
    return %c0_i32, %c0_i32_0 : i32, i32
  }
  func.func @transform_5(%arg0: i32, %arg1: i32) -> (i32, i32) {
    %c0_i32 = arith.constant 0 : i32
    %c0_i32_0 = arith.constant 0 : i32
    %c0_i32_1 = arith.constant 0 : i32
    return %c0_i32, %c0_i32_0 : i32, i32
  }
  func.func @transform_6(%arg0: i32, %arg1: i32) -> (i32, i32) {
    %c0_i32 = arith.constant 0 : i32
    %c0_i32_0 = arith.constant 0 : i32
    %c0_i32_1 = arith.constant 0 : i32
    return %c0_i32, %c0_i32_0 : i32, i32
  }
  func.func @transform_7(%arg0: i32, %arg1: i32) -> (i32, i32) {
    %c0_i32 = arith.constant 0 : i32
    %c0_i32_0 = arith.constant 0 : i32
    %c0_i32_1 = arith.constant 0 : i32
    return %c0_i32, %c0_i32_0 : i32, i32
  }
  func.func @transform_8(%arg0: i32, %arg1: i32) -> (i32, i32) {
    %c0_i32 = arith.constant 0 : i32
    %c0_i32_0 = arith.constant 0 : i32
    %c0_i32_1 = arith.constant 0 : i32
    return %c0_i32, %c0_i32_0 : i32, i32
  }
  func.func @transform_9(%arg0: i32, %arg1: i32) -> (i32, i32) {
    %c0_i32 = arith.constant 0 : i32
    %c0_i32_0 = arith.constant 0 : i32
    %c0_i32_1 = arith.constant 0 : i32
    return %c0_i32, %c0_i32_0 : i32, i32
  }
  func.func @transform_10(%arg0: i32, %arg1: i32) -> (i32, i32) {
    %c0_i32 = arith.constant 0 : i32
    %c0_i32_0 = arith.constant 0 : i32
    %c0_i32_1 = arith.constant 0 : i32
    return %c0_i32, %c0_i32_0 : i32, i32
  }
  func.func @transform_11(%arg0: i32, %arg1: i32) -> (i32, i32) {
    %c0_i32 = arith.constant 0 : i32
    %c0_i32_0 = arith.constant 0 : i32
    %c0_i32_1 = arith.constant 0 : i32
    return %c0_i32, %c0_i32_0 : i32, i32
  }
  func.func @transform_12(%arg0: i32, %arg1: i32) -> (i32, i32) {
    %c0_i32 = arith.constant 0 : i32
    %c0_i32_0 = arith.constant 0 : i32
    %c0_i32_1 = arith.constant 0 : i32
    return %c0_i32, %c0_i32_0 : i32, i32
  }
  func.func @transform_13(%arg0: i32, %arg1: i32) -> (i32, i32) {
    %c0_i32 = arith.constant 0 : i32
    %c0_i32_0 = arith.constant 0 : i32
    %c0_i32_1 = arith.constant 0 : i32
    return %c0_i32, %c0_i32_0 : i32, i32
  }
  func.func @transform_14(%arg0: i32, %arg1: i32) -> (i32, i32) {
    %c0_i32 = arith.constant 0 : i32
    %c0_i32_0 = arith.constant 0 : i32
    %c0_i32_1 = arith.constant 0 : i32
    return %c0_i32, %c0_i32_0 : i32, i32
  }
  func.func @transform_15(%arg0: i32, %arg1: i32) -> (i32, i32) {
    %c0_i32 = arith.constant 0 : i32
    %c0_i32_0 = arith.constant 0 : i32
    %c0_i32_1 = arith.constant 0 : i32
    return %c0_i32, %c0_i32_0 : i32, i32
  }
  func.func @transform_16(%arg0: i32, %arg1: i32) -> (i32, i32) {
    %c0_i32 = arith.constant 0 : i32
    %c0_i32_0 = arith.constant 0 : i32
    %c0_i32_1 = arith.constant 0 : i32
    return %c0_i32, %c0_i32_0 : i32, i32
  }
  func.func @transform_17(%arg0: i32, %arg1: i32) -> (i32, i32) {
    %c0_i32 = arith.constant 0 : i32
    %c0_i32_0 = arith.constant 0 : i32
    %c0_i32_1 = arith.constant 0 : i32
    return %c0_i32, %c0_i32_0 : i32, i32
  }
  func.func @transform_18(%arg0: i32, %arg1: i32) -> (i32, i32) {
    %c0_i32 = arith.constant 0 : i32
    %c0_i32_0 = arith.constant 0 : i32
    %c0_i32_1 = arith.constant 0 : i32
    return %c0_i32, %c0_i32_0 : i32, i32
  }
  func.func @transform_19(%arg0: i32, %arg1: i32) -> (i32, i32, i32) {
    %c0_i32 = arith.constant 0 : i32
    %c0_i32_0 = arith.constant 0 : i32
    return %arg0, %arg1, %c0_i32 : i32, i32, i32
  }
}

</mosaic_0001>

<llo_original>
// kernel: tpu_custom_call.1
$region0: #{tpu_custom_call.1}
  #allocation0 [shape = 'u32[]', space=smem, size = 0x4, offset = 0x4, fixed_abs, tag = 'smem constant byte address 0x4 - core index']
  #allocation1 [shape = 'u32[144,128]{1,0:T(1,128)}', space=vmem, size = 0x12000, scoped, tag = 'internal scratch']
  #allocation2 [shape = 'bf16[16,32]{1,0:T(16,128)(2,1)}', space=vmem, size = 0x1000, scoped, tag = 'scratch operand']
  #allocation3 [shape = 'bf16[16,32]{1,0:T(16,128)(2,1)}', space=vmem, size = 0x1000, scoped, tag = 'scratch operand']
  %s0 = inlined_call_operand.vmem [shape: f32[2,16,32], index: 0, kind: input, shape index: {}]
  %s1 = inlined_call_operand.hbm [shape: f32[2,16,32], index: 1, kind: input, shape index: {}]
  %s2 = inlined_call_operand.hbm [shape: f32[2,1,16], index: 2, kind: input, shape index: {}]
  %s3 = inlined_call_operand.vmem [shape: bf16[32,32], index: 3, kind: input, shape index: {}]
  %s4 = inlined_call_operand.vmem [shape: f32[1,32], index: 4, kind: input, shape index: {}]
  %s5 = inlined_call_operand.hbm [shape: bf16[32,32], index: 5, kind: input, shape index: {}]
  %s6 = inlined_call_operand.hbm [shape: f32[1,32], index: 6, kind: input, shape index: {}]
  %s7 = inlined_call_operand.hbm [shape: bf16[32,32], index: 7, kind: input, shape index: {}]
  %s8 = inlined_call_operand.hbm [shape: f32[1,32], index: 8, kind: input, shape index: {}]
  %s9 = inlined_call_operand.vmem [shape: bf16[32,32], index: 9, kind: input, shape index: {}]
  %s10 = inlined_call_operand.hbm [shape: f32[1,32], index: 10, kind: input, shape index: {}]
  %s11 = inlined_call_operand.hbm [shape: f32[1,32], index: 11, kind: input, shape index: {}]
  %s12 = inlined_call_operand.hbm [shape: f32[1,32], index: 12, kind: input, shape index: {}]
  %s13 = inlined_call_operand.vmem [shape: bf16[32,64], index: 13, kind: input, shape index: {}]
  %s14 = inlined_call_operand.vmem [shape: f32[1,64], index: 14, kind: input, shape index: {}]
  %s15 = inlined_call_operand.vmem [shape: bf16[64,32], index: 15, kind: input, shape index: {}]
  %s16 = inlined_call_operand.vmem [shape: f32[1,32], index: 16, kind: input, shape index: {}]
  %s17 = inlined_call_operand.vmem [shape: f32[1,32], index: 17, kind: input, shape index: {}]
  %s18 = inlined_call_operand.vmem [shape: f32[1,32], index: 18, kind: input, shape index: {}]
  %s19 = inlined_call_operand.hbm [shape: f32[2,16,32], index: 19, kind: output, shape index: {}]
  %s20 = sld [smem:[#allocation0]]
  $region149: #{tpu_custom_call.1} parent=0
    _
  %s22 = ssub.s32 1, %s20
  %s23 = scalar_select 0, %s22, %s20
  $region1: #{tpu_custom_call.1} parent=0
    #allocation4 [shape = 'u8[16384]{0}', space=vmem, size = 0x4000, scoped, tag = 'input window, operand 1']
    #allocation5 [shape = 's32[2]{0}', space=sflag, size = 0x8, scoped, tag = 'scoped memory for tpu_custom_call.1']
    #allocation6 [shape = 's32[2]{0}', space=sflag, size = 0x8, scoped, tag = 'scoped memory for tpu_custom_call.1']
    #allocation7 [shape = 'u8[1024]{0}', space=vmem, size = 0x400, scoped, tag = 'input window, operand 2']
    #allocation8 [shape = 's32[2]{0}', space=sflag, size = 0x8, scoped, tag = 'scoped memory for tpu_custom_call.1']
    #allocation9 [shape = 'u8[8192]{0}', space=vmem, size = 0x2000, scoped, tag = 'input window, operand 5, single buffered']
    #allocation10 [shape = 'u8[512]{0}', space=vmem, size = 0x400, scoped, tag = 'input window, operand 6, single buffered']
    #allocation11 [shape = 's32[1]{0}', space=sflag, size = 0x4, scoped, tag = 'scoped memory for tpu_custom_call.1']
    #allocation12 [shape = 'u8[8192]{0}', space=vmem, size = 0x2000, scoped, tag = 'input window, operand 7, single buffered']
    #allocation13 [shape = 'u8[512]{0}', space=vmem, size = 0x400, scoped, tag = 'input window, operand 8, single buffered']
    #allocation14 [shape = 's32[1]{0}', space=sflag, size = 0x4, scoped, tag = 'scoped memory for tpu_custom_call.1']
    #allocation15 [shape = 'u8[512]{0}', space=vmem, size = 0x400, scoped, tag = 'input window, operand 10, single buffered']
    #allocation16 [shape = 'u8[512]{0}', space=vmem, size = 0x400, scoped, tag = 'input window, operand 11, single buffered']
    #allocation17 [shape = 's32[1]{0}', space=sflag, size = 0x4, scoped, tag = 'scoped memory for tpu_custom_call.1']
    #allocation18 [shape = 'u8[512]{0}', space=vmem, size = 0x400, scoped, tag = 'input window, operand 12, single buffered']
    #allocation19 [shape = 'u8[8192]{0}', space=vmem, size = 0x2000, scoped, tag = 'output window, operand 0']
    %24 = vsyncpa [#allocation5], 0
    %s25 = scalar_lea.sflag [#allocation5], 1
    %26 = vsyncpa %s25, 0
    %27 = vsyncpa [#allocation8], 0
    %s28 = scalar_lea.sflag [#allocation8], 1
    %29 = vsyncpa %s28, 0
    %30 = vsyncpa [#allocation11], 0
    %31 = vsyncpa [#allocation14], 0
    %32 = vsyncpa [#allocation17], 0
    %33 = vsyncpa [#allocation6], 0
    %s34 = scalar_lea.sflag [#allocation6], 1
    %35 = vsyncpa %s34, 0
    loop: start=0, step=1, limit=6
    $region2: #{tpu_custom_call.1} parent=1 // loop_pre_header
      _
    $region3: #{tpu_custom_call.1} parent=1 // loop_header
      %s37 = sphi 0, %s41
      %p38 = scmp.ge.s32.totalorder %s37, 6
      %s44 = sphi 0, %s56
      %s45 = sphi 0, %s52
      %s46 = sphi 0, %s44
      %s47 = sphi 0, %s45
      %s48 = sphi 0, %s46
      %s49 = sphi 0, %s47
      %s61 = sphi 0, %s63
      %s64 = sphi 0, %s61
      %s65 = sphi 0, %s64
      %s81 = sphi 0, %s65
      %s87 = sphi 0, %s89
      %s90 = sphi 0, %s87
      %s91 = sphi 0, %s90
      %s107 = sphi 0, %s91
      %s113 = sphi 0, %s115
      %s116 = sphi 0, %s113
      %s117 = sphi 0, %s116
      %s133 = sphi 0, %s117
      %s137 = sphi 0, %s137
      %s139 = sphi 0, %s137
      %s140 = sphi 0, %s139
      %s154 = sphi 0, %s140
      %s158 = sphi 0, %s158
      %s160 = sphi 0, %s158
      %s161 = sphi 0, %s160
      %s175 = sphi 0, %s161
      %s179 = sphi 0, %s179
      %s181 = sphi 0, %s179
      %s182 = sphi 0, %s181
      %s196 = sphi 0, %s182
      %s200 = sphi 0, %s200
      %s202 = sphi 0, %s200
      %s203 = sphi 0, %s202
      %s217 = sphi 0, %s203
      %s221 = sphi 0, %s221
      %s223 = sphi 0, %s221
      %s224 = sphi 0, %s223
      %s238 = sphi 0, %s224
      %s242 = sphi 0, %s242
      %s244 = sphi 0, %s242
      %s245 = sphi 0, %s244
      %s259 = sphi 0, %s245
      %s263 = sphi 0, %s263
      %s265 = sphi 0, %s263
      %s266 = sphi 0, %s265
      %s280 = sphi 0, %s266
      %s284 = sphi 0, %s284
      %s286 = sphi 0, %s284
      %s287 = sphi 0, %s286
      %s301 = sphi 0, %s287
      %s305 = sphi 0, %s305
      %s307 = sphi 0, %s305
      %s308 = sphi 0, %s307
      %s322 = sphi 0, %s308
      %s326 = sphi 0, %s326
      %s328 = sphi 0, %s326
      %s329 = sphi 0, %s328
      %s343 = sphi 0, %s329
      %s347 = sphi 0, %s347
      %s349 = sphi 0, %s347
      %s350 = sphi 0, %s349
      %s364 = sphi 0, %s350
      %s368 = sphi 0, %s368
      %s370 = sphi 0, %s368
      %s371 = sphi 0, %s370
      %s385 = sphi 0, %s371
      %s389 = sphi 0, %s389
      %s391 = sphi 0, %s389
      %s392 = sphi 0, %s391
      %s406 = sphi 0, %s392
      %s410 = sphi 0, %s410
      %s412 = sphi 0, %s410
      %s413 = sphi 0, %s412
      %s427 = sphi 0, %s413
      %s431 = sphi 0, %s431
      %s433 = sphi 0, %s431
      %s434 = sphi 0, %s433
      %s448 = sphi 0, %s434
      %s452 = sphi 0, %s452
      %s454 = sphi 0, %s452
      %s455 = sphi 0, %s454
      %s469 = sphi 0, %s455
      %s477 = sphi 0, %s479
      %s480 = sphi 0, %s477
      %s481 = sphi 0, %s480
      %s497 = sphi 0, %s481
    $region4: #{tpu_custom_call.1} parent=1 // loop_header_branch
      %40 = sbr.rel (%p38) target = $region8
    $region5: #{tpu_custom_call.1} parent=1 // loop_body
      %s42 = ssub.s32 %s37, 1
      %s43 = ssub.s32 %s37, 2
      %s50 = sadd.s32 1, %s45
      %p51 = scmp.ge.s32.totalorder %s50, 2
      %s52 = scalar_select %p51, 0, %s50
      %s53 = sadd.s32 1, %s44
      %s54 = scalar_select %p51, %s53, %s44
      %p55 = scmp.ge.s32.totalorder %s54, 2
      %s56 = scalar_select %p55, 0, %s54
      %s57 = ssub.s32 %s44, %s56
      %s58 = ssub.s32 %s45, %s52
      %s59 = sor.u32 %s57, %s58
      %p60 = scmp.eq.s32.totalorder %s59, 0
      %s62 = sadd.s32 %s61, 1
      %s63 = scalar_select %p60, %s61, %s62
      %p66 = pneg %p60
      %p67 = scmp.eq.s32.totalorder %s37, 3
      %p68 = por %p66, %p67
      %p69 = scmp.ne.s32.totalorder %s61, %s64
      %p70 = scmp.eq.s32.totalorder %s37, 0
      %p71 = por %p69, %p70
      %p72 = scmp.ne.s32.totalorder %s61, %s64
      %p73 = scmp.eq.s32.totalorder %s42, 3
      %p74 = por %p72, %p73
      %p75 = scmp.ne.s32.totalorder %s64, %s65
      %p76 = scmp.eq.s32.totalorder %s42, 0
      %p77 = por %p75, %p76
      %p78 = scmp.ne.s32.totalorder %s64, %s65
      %p79 = scmp.eq.s32.totalorder %s43, 3
      %p80 = por %p78, %p79
      %p82 = scmp.ne.s32.totalorder %s65, %s81
      %p83 = scmp.eq.s32.totalorder %s43, 0
      %p84 = por %p82, %p83
      %s85 = ssub.s32 %s44, %s56
      %p86 = scmp.eq.s32.totalorder %s85, 0
      %s88 = sadd.s32 %s87, 1
      %s89 = scalar_select %p86, %s87, %s88
      %p92 = pneg %p86
      %p93 = scmp.eq.s32.totalorder %s37, 3
      %p94 = por %p92, %p93
      %p95 = scmp.ne.s32.totalorder %s87, %s90
      %p96 = scmp.eq.s32.totalorder %s37, 0
      %p97 = por %p95, %p96
      %p98 = scmp.ne.s32.totalorder %s87, %s90
      %p99 = scmp.eq.s32.totalorder %s42, 3
      %p100 = por %p98, %p99
      %p101 = scmp.ne.s32.totalorder %s90, %s91
      %p102 = scmp.eq.s32.totalorder %s42, 0
      %p103 = por %p101, %p102
      %p104 = scmp.ne.s32.totalorder %s90, %s91
      %p105 = scmp.eq.s32.totalorder %s43, 3
      %p106 = por %p104, %p105
      %p108 = scmp.ne.s32.totalorder %s91, %s107
      %p109 = scmp.eq.s32.totalorder %s43, 0
      %p110 = por %p108, %p109
      %s111 = ssub.s32 %s44, %s56
      %p112 = scmp.eq.s32.totalorder %s111, 0
      %s114 = sadd.s32 %s113, 1
      %s115 = scalar_select %p112, %s113, %s114
      %p118 = pneg %p112
      %p119 = scmp.eq.s32.totalorder %s37, 3
      %p120 = por %p118, %p119
      %p121 = scmp.ne.s32.totalorder %s113, %s116
      %p122 = scmp.eq.s32.totalorder %s37, 0
      %p123 = por %p121, %p122
      %p124 = scmp.ne.s32.totalorder %s113, %s116
      %p125 = scmp.eq.s32.totalorder %s42, 3
      %p126 = por %p124, %p125
      %p127 = scmp.ne.s32.totalorder %s116, %s117
      %p128 = scmp.eq.s32.totalorder %s42, 0
      %p129 = por %p127, %p128
      %p130 = scmp.ne.s32.totalorder %s116, %s117
      %p131 = scmp.eq.s32.totalorder %s43, 3
      %p132 = por %p130, %p131
      %p134 = scmp.ne.s32.totalorder %s117, %s133
      %p135 = scmp.eq.s32.totalorder %s43, 0
      %p136 = por %p134, %p135
      %s138 = sadd.s32 %s137, 1
      %p141 = scmp.eq.s32.totalorder %s37, 3
      %p142 = scmp.ne.s32.totalorder %s137, %s139
      %p143 = scmp.eq.s32.totalorder %s37, 0
      %p144 = por %p142, %p143
      %p145 = scmp.ne.s32.totalorder %s137, %s139
      %p146 = scmp.eq.s32.totalorder %s42, 3
      %p147 = por %p145, %p146
      %p148 = scmp.ne.s32.totalorder %s139, %s140
      %p149 = scmp.eq.s32.totalorder %s42, 0
      %p150 = por %p148, %p149
      %p151 = scmp.ne.s32.totalorder %s139, %s140
      %p152 = scmp.eq.s32.totalorder %s43, 3
      %p153 = por %p151, %p152
      %p155 = scmp.ne.s32.totalorder %s140, %s154
      %p156 = scmp.eq.s32.totalorder %s43, 0
      %p157 = por %p155, %p156
      %s159 = sadd.s32 %s158, 1
      %p162 = scmp.eq.s32.totalorder %s37, 3
      %p163 = scmp.ne.s32.totalorder %s158, %s160
      %p164 = scmp.eq.s32.totalorder %s37, 0
      %p165 = por %p163, %p164
      %p166 = scmp.ne.s32.totalorder %s158, %s160
      %p167 = scmp.eq.s32.totalorder %s42, 3
      %p168 = por %p166, %p167
      %p169 = scmp.ne.s32.totalorder %s160, %s161
      %p170 = scmp.eq.s32.totalorder %s42, 0
      %p171 = por %p169, %p170
      %p172 = scmp.ne.s32.totalorder %s160, %s161
      %p173 = scmp.eq.s32.totalorder %s43, 3
      %p174 = por %p172, %p173
      %p176 = scmp.ne.s32.totalorder %s161, %s175
      %p177 = scmp.eq.s32.totalorder %s43, 0
      %p178 = por %p176, %p177
      %s180 = sadd.s32 %s179, 1
      %p183 = scmp.eq.s32.totalorder %s37, 3
      %p184 = scmp.ne.s32.totalorder %s179, %s181
      %p185 = scmp.eq.s32.totalorder %s37, 0
      %p186 = por %p184, %p185
      %p187 = scmp.ne.s32.totalorder %s179, %s181
      %p188 = scmp.eq.s32.totalorder %s42, 3
      %p189 = por %p187, %p188
      %p190 = scmp.ne.s32.totalorder %s181, %s182
      %p191 = scmp.eq.s32.totalorder %s42, 0
      %p192 = por %p190, %p191
      %p193 = scmp.ne.s32.totalorder %s181, %s182
      %p194 = scmp.eq.s32.totalorder %s43, 3
      %p195 = por %p193, %p194
      %p197 = scmp.ne.s32.totalorder %s182, %s196
      %p198 = scmp.eq.s32.totalorder %s43, 0
      %p199 = por %p197, %p198
      %s201 = sadd.s32 %s200, 1
      %p204 = scmp.eq.s32.totalorder %s37, 3
      %p205 = scmp.ne.s32.totalorder %s200, %s202
      %p206 = scmp.eq.s32.totalorder %s37, 0
      %p207 = por %p205, %p206
      %p208 = scmp.ne.s32.totalorder %s200, %s202
      %p209 = scmp.eq.s32.totalorder %s42, 3
      %p210 = por %p208, %p209
      %p211 = scmp.ne.s32.totalorder %s202, %s203
      %p212 = scmp.eq.s32.totalorder %s42, 0
      %p213 = por %p211, %p212
      %p214 = scmp.ne.s32.totalorder %s202, %s203
      %p215 = scmp.eq.s32.totalorder %s43, 3
      %p216 = por %p214, %p215
      %p218 = scmp.ne.s32.totalorder %s203, %s217
      %p219 = scmp.eq.s32.totalorder %s43, 0
      %p220 = por %p218, %p219
      %s222 = sadd.s32 %s221, 1
      %p225 = scmp.eq.s32.totalorder %s37, 3
      %p226 = scmp.ne.s32.totalorder %s221, %s223
      %p227 = scmp.eq.s32.totalorder %s37, 0
      %p228 = por %p226, %p227
      %p229 = scmp.ne.s32.totalorder %s221, %s223
      %p230 = scmp.eq.s32.totalorder %s42, 3
      %p231 = por %p229, %p230
      %p232 = scmp.ne.s32.totalorder %s223, %s224
      %p233 = scmp.eq.s32.totalorder %s42, 0
      %p234 = por %p232, %p233
      %p235 = scmp.ne.s32.totalorder %s223, %s224
      %p236 = scmp.eq.s32.totalorder %s43, 3
      %p237 = por %p235, %p236
      %p239 = scmp.ne.s32.totalorder %s224, %s238
      %p240 = scmp.eq.s32.totalorder %s43, 0
      %p241 = por %p239, %p240
      %s243 = sadd.s32 %s242, 1
      %p246 = scmp.eq.s32.totalorder %s37, 3
      %p247 = scmp.ne.s32.totalorder %s242, %s244
      %p248 = scmp.eq.s32.totalorder %s37, 0
      %p249 = por %p247, %p248
      %p250 = scmp.ne.s32.totalorder %s242, %s244
      %p251 = scmp.eq.s32.totalorder %s42, 3
      %p252 = por %p250, %p251
      %p253 = scmp.ne.s32.totalorder %s244, %s245
      %p254 = scmp.eq.s32.totalorder %s42, 0
      %p255 = por %p253, %p254
      %p256 = scmp.ne.s32.totalorder %s244, %s245
      %p257 = scmp.eq.s32.totalorder %s43, 3
      %p258 = por %p256, %p257
      %p260 = scmp.ne.s32.totalorder %s245, %s259
      %p261 = scmp.eq.s32.totalorder %s43, 0
      %p262 = por %p260, %p261
      %s264 = sadd.s32 %s263, 1
      %p267 = scmp.eq.s32.totalorder %s37, 3
      %p268 = scmp.ne.s32.totalorder %s263, %s265
      %p269 = scmp.eq.s32.totalorder %s37, 0
      %p270 = por %p268, %p269
      %p271 = scmp.ne.s32.totalorder %s263, %s265
      %p272 = scmp.eq.s32.totalorder %s42, 3
      %p273 = por %p271, %p272
      %p274 = scmp.ne.s32.totalorder %s265, %s266
      %p275 = scmp.eq.s32.totalorder %s42, 0
      %p276 = por %p274, %p275
      %p277 = scmp.ne.s32.totalorder %s265, %s266
      %p278 = scmp.eq.s32.totalorder %s43, 3
      %p279 = por %p277, %p278
      %p281 = scmp.ne.s32.totalorder %s266, %s280
      %p282 = scmp.eq.s32.totalorder %s43, 0
      %p283 = por %p281, %p282
      %s285 = sadd.s32 %s284, 1
      %p288 = scmp.eq.s32.totalorder %s37, 3
      %p289 = scmp.ne.s32.totalorder %s284, %s286
      %p290 = scmp.eq.s32.totalorder %s37, 0
      %p291 = por %p289, %p290
      %p292 = scmp.ne.s32.totalorder %s284, %s286
      %p293 = scmp.eq.s32.totalorder %s42, 3
      %p294 = por %p292, %p293
      %p295 = scmp.ne.s32.totalorder %s286, %s287
      %p296 = scmp.eq.s32.totalorder %s42, 0
      %p297 = por %p295, %p296
      %p298 = scmp.ne.s32.totalorder %s286, %s287
      %p299 = scmp.eq.s32.totalorder %s43, 3
      %p300 = por %p298, %p299
      %p302 = scmp.ne.s32.totalorder %s287, %s301
      %p303 = scmp.eq.s32.totalorder %s43, 0
      %p304 = por %p302, %p303
      %s306 = sadd.s32 %s305, 1
      %p309 = scmp.eq.s32.totalorder %s37, 3
      %p310 = scmp.ne.s32.totalorder %s305, %s307
      %p311 = scmp.eq.s32.totalorder %s37, 0
      %p312 = por %p310, %p311
      %p313 = scmp.ne.s32.totalorder %s305, %s307
      %p314 = scmp.eq.s32.totalorder %s42, 3
      %p315 = por %p313, %p314
      %p316 = scmp.ne.s32.totalorder %s307, %s308
      %p317 = scmp.eq.s32.totalorder %s42, 0
      %p318 = por %p316, %p317
      %p319 = scmp.ne.s32.totalorder %s307, %s308
      %p320 = scmp.eq.s32.totalorder %s43, 3
      %p321 = por %p319, %p320
      %p323 = scmp.ne.s32.totalorder %s308, %s322
      %p324 = scmp.eq.s32.totalorder %s43, 0
      %p325 = por %p323, %p324
      %s327 = sadd.s32 %s326, 1
      %p330 = scmp.eq.s32.totalorder %s37, 3
      %p331 = scmp.ne.s32.totalorder %s326, %s328
      %p332 = scmp.eq.s32.totalorder %s37, 0
      %p333 = por %p331, %p332
      %p334 = scmp.ne.s32.totalorder %s326, %s328
      %p335 = scmp.eq.s32.totalorder %s42, 3
      %p336 = por %p334, %p335
      %p337 = scmp.ne.s32.totalorder %s328, %s329
      %p338 = scmp.eq.s32.totalorder %s42, 0
      %p339 = por %p337, %p338
      %p340 = scmp.ne.s32.totalorder %s328, %s329
      %p341 = scmp.eq.s32.totalorder %s43, 3
      %p342 = por %p340, %p341
      %p344 = scmp.ne.s32.totalorder %s329, %s343
      %p345 = scmp.eq.s32.totalorder %s43, 0
      %p346 = por %p344, %p345
      %s348 = sadd.s32 %s347, 1
      %p351 = scmp.eq.s32.totalorder %s37, 3
      %p352 = scmp.ne.s32.totalorder %s347, %s349
      %p353 = scmp.eq.s32.totalorder %s37, 0
      %p354 = por %p352, %p353
      %p355 = scmp.ne.s32.totalorder %s347, %s349
      %p356 = scmp.eq.s32.totalorder %s42, 3
      %p357 = por %p355, %p356
      %p358 = scmp.ne.s32.totalorder %s349, %s350
      %p359 = scmp.eq.s32.totalorder %s42, 0
      %p360 = por %p358, %p359
      %p361 = scmp.ne.s32.totalorder %s349, %s350
      %p362 = scmp.eq.s32.totalorder %s43, 3
      %p363 = por %p361, %p362
      %p365 = scmp.ne.s32.totalorder %s350, %s364
      %p366 = scmp.eq.s32.totalorder %s43, 0
      %p367 = por %p365, %p366
      %s369 = sadd.s32 %s368, 1
      %p372 = scmp.eq.s32.totalorder %s37, 3
      %p373 = scmp.ne.s32.totalorder %s368, %s370
      %p374 = scmp.eq.s32.totalorder %s37, 0
      %p375 = por %p373, %p374
      %p376 = scmp.ne.s32.totalorder %s368, %s370
      %p377 = scmp.eq.s32.totalorder %s42, 3
      %p378 = por %p376, %p377
      %p379 = scmp.ne.s32.totalorder %s370, %s371
      %p380 = scmp.eq.s32.totalorder %s42, 0
      %p381 = por %p379, %p380
      %p382 = scmp.ne.s32.totalorder %s370, %s371
      %p383 = scmp.eq.s32.totalorder %s43, 3
      %p384 = por %p382, %p383
      %p386 = scmp.ne.s32.totalorder %s371, %s385
      %p387 = scmp.eq.s32.totalorder %s43, 0
      %p388 = por %p386, %p387
      %s390 = sadd.s32 %s389, 1
      %p393 = scmp.eq.s32.totalorder %s37, 3
      %p394 = scmp.ne.s32.totalorder %s389, %s391
      %p395 = scmp.eq.s32.totalorder %s37, 0
      %p396 = por %p394, %p395
      %p397 = scmp.ne.s32.totalorder %s389, %s391
      %p398 = scmp.eq.s32.totalorder %s42, 3
      %p399 = por %p397, %p398
      %p400 = scmp.ne.s32.totalorder %s391, %s392
      %p401 = scmp.eq.s32.totalorder %s42, 0
      %p402 = por %p400, %p401
      %p403 = scmp.ne.s32.totalorder %s391, %s392
      %p404 = scmp.eq.s32.totalorder %s43, 3
      %p405 = por %p403, %p404
      %p407 = scmp.ne.s32.totalorder %s392, %s406
      %p408 = scmp.eq.s32.totalorder %s43, 0
      %p409 = por %p407, %p408
      %s411 = sadd.s32 %s410, 1
      %p414 = scmp.eq.s32.totalorder %s37, 3
      %p415 = scmp.ne.s32.totalorder %s410, %s412
      %p416 = scmp.eq.s32.totalorder %s37, 0
      %p417 = por %p415, %p416
      %p418 = scmp.ne.s32.totalorder %s410, %s412
      %p419 = scmp.eq.s32.totalorder %s42, 3
      %p420 = por %p418, %p419
      %p421 = scmp.ne.s32.totalorder %s412, %s413
      %p422 = scmp.eq.s32.totalorder %s42, 0
      %p423 = por %p421, %p422
      %p424 = scmp.ne.s32.totalorder %s412, %s413
      %p425 = scmp.eq.s32.totalorder %s43, 3
      %p426 = por %p424, %p425
      %p428 = scmp.ne.s32.totalorder %s413, %s427
      %p429 = scmp.eq.s32.totalorder %s43, 0
      %p430 = por %p428, %p429
      %s432 = sadd.s32 %s431, 1
      %p435 = scmp.eq.s32.totalorder %s37, 3
      %p436 = scmp.ne.s32.totalorder %s431, %s433
      %p437 = scmp.eq.s32.totalorder %s37, 0
      %p438 = por %p436, %p437
      %p439 = scmp.ne.s32.totalorder %s431, %s433
      %p440 = scmp.eq.s32.totalorder %s42, 3
      %p441 = por %p439, %p440
      %p442 = scmp.ne.s32.totalorder %s433, %s434
      %p443 = scmp.eq.s32.totalorder %s42, 0
      %p444 = por %p442, %p443
      %p445 = scmp.ne.s32.totalorder %s433, %s434
      %p446 = scmp.eq.s32.totalorder %s43, 3
      %p447 = por %p445, %p446
      %p449 = scmp.ne.s32.totalorder %s434, %s448
      %p450 = scmp.eq.s32.totalorder %s43, 0
      %p451 = por %p449, %p450
      %s453 = sadd.s32 %s452, 1
      %p456 = scmp.eq.s32.totalorder %s37, 3
      %p457 = scmp.ne.s32.totalorder %s452, %s454
      %p458 = scmp.eq.s32.totalorder %s37, 0
      %p459 = por %p457, %p458
      %p460 = scmp.ne.s32.totalorder %s452, %s454
      %p461 = scmp.eq.s32.totalorder %s42, 3
      %p462 = por %p460, %p461
      %p463 = scmp.ne.s32.totalorder %s454, %s455
      %p464 = scmp.eq.s32.totalorder %s42, 0
      %p465 = por %p463, %p464
      %p466 = scmp.ne.s32.totalorder %s454, %s455
      %p467 = scmp.eq.s32.totalorder %s43, 3
      %p468 = por %p466, %p467
      %p470 = scmp.ne.s32.totalorder %s455, %s469
      %p471 = scmp.eq.s32.totalorder %s43, 0
      %p472 = por %p470, %p471
      %s473 = ssub.s32 %s44, %s56
      %s474 = ssub.s32 %s45, %s52
      %s475 = sor.u32 %s473, %s474
      %p476 = scmp.eq.s32.totalorder %s475, 0
      %s478 = sadd.s32 %s477, 1
      %s479 = scalar_select %p476, %s477, %s478
      %p482 = pneg %p476
      %p483 = scmp.eq.s32.totalorder %s37, 3
      %p484 = por %p482, %p483
      %p485 = scmp.ne.s32.totalorder %s477, %s480
      %p486 = scmp.eq.s32.totalorder %s37, 0
      %p487 = por %p485, %p486
      %p488 = scmp.ne.s32.totalorder %s477, %s480
      %p489 = scmp.eq.s32.totalorder %s42, 3
      %p490 = por %p488, %p489
      %p491 = scmp.ne.s32.totalorder %s480, %s481
      %p492 = scmp.eq.s32.totalorder %s42, 0
      %p493 = por %p491, %p492
      %p494 = scmp.ne.s32.totalorder %s480, %s481
      %p495 = scmp.eq.s32.totalorder %s43, 3
      %p496 = por %p494, %p495
      %p498 = scmp.ne.s32.totalorder %s481, %s497
      %p499 = scmp.eq.s32.totalorder %s43, 0
      %p500 = por %p498, %p499
      %p501 = scmp.le.s32.totalorder 1, %s37
      %p502 = scmp.lt.s32.totalorder %s37, 5
      %p503 = pnand %p501, %p502
      %p504 = pneg %p503
      // Predicated region
      $region9: #{tpu_custom_call.1} parent=5 // pred_check
        _
      $region10: #{tpu_custom_call.1} parent=5 // pred_check_branch
        %506 = sbr.rel (%p503) target = $region12
      $region11: #{tpu_custom_call.1} parent=5 // pred_region
        %s507 = ssub.s32 %s37, 1
        // Predicated region
        $region13: #{tpu_custom_call.1} parent=11 // pred_check
          %p508 = pneg %p150
        $region14: #{tpu_custom_call.1} parent=11 // pred_check_branch
          %510 = sbr.rel (%p508) target = $region16
        $region15: #{tpu_custom_call.1} parent=11 // pred_region
          _
        $region16: #{tpu_custom_call.1} parent=11 // pred_fallthru
          _
        // Predicated region
        $region17: #{tpu_custom_call.1} parent=11 // pred_check
          %p511 = pneg %p171
        $region18: #{tpu_custom_call.1} parent=11 // pred_check_branch
          %513 = sbr.rel (%p511) target = $region20
        $region19: #{tpu_custom_call.1} parent=11 // pred_region
          _
        $region20: #{tpu_custom_call.1} parent=11 // pred_fallthru
          _
        // Predicated region
        $region21: #{tpu_custom_call.1} parent=11 // pred_check
          %p514 = pneg %p192
        $region22: #{tpu_custom_call.1} parent=11 // pred_check_branch
          %516 = sbr.rel (%p514) target = $region24
        $region23: #{tpu_custom_call.1} parent=11 // pred_region
          %s518 = ssub.s32 256, 256
          %519 = vsyncadd [#allocation8], %s518
          %s520 = sshll.u32 [#allocation9], 4
          %s521 = int_to_ptr.vmem [resolvable:$true] %s520
          %526 = dma.hbm_to_vmem [thread:$0]  %s5, 256, %s521, [#allocation8], 64, 64, 4
        $region24: #{tpu_custom_call.1} parent=11 // pred_fallthru
          _
        // Predicated region
        $region25: #{tpu_custom_call.1} parent=11 // pred_check
          %p527 = pneg %p213
        $region26: #{tpu_custom_call.1} parent=11 // pred_check_branch
          %529 = sbr.rel (%p527) target = $region28
        $region27: #{tpu_custom_call.1} parent=11 // pred_region
          %s531 = ssub.s32 16, 16
          %532 = vsyncadd [#allocation11], %s531
          %s534 = sshll.u32 [#allocation10], 4
          %s535 = int_to_ptr.vmem [resolvable:$true] %s534
          %537 = dma.hbm_to_vmem [thread:$0]  %s6, 16, %s535, [#allocation11]
        $region28: #{tpu_custom_call.1} parent=11 // pred_fallthru
          _
        // Predicated region
        $region29: #{tpu_custom_call.1} parent=11 // pred_check
          %p538 = pneg %p234
        $region30: #{tpu_custom_call.1} parent=11 // pred_check_branch
          %540 = sbr.rel (%p538) target = $region32
        $region31: #{tpu_custom_call.1} parent=11 // pred_region
          %s542 = ssub.s32 256, 256
          %543 = vsyncadd [#allocation11], %s542
          %s544 = sshll.u32 [#allocation12], 4
          %s545 = int_to_ptr.vmem [resolvable:$true] %s544
          %550 = dma.hbm_to_vmem [thread:$0]  %s7, 256, %s545, [#allocation11], 64, 64, 4
        $region32: #{tpu_custom_call.1} parent=11 // pred_fallthru
          _
        // Predicated region
        $region33: #{tpu_custom_call.1} parent=11 // pred_check
          %p551 = pneg %p255
        $region34: #{tpu_custom_call.1} parent=11 // pred_check_branch
          %553 = sbr.rel (%p551) target = $region36
        $region35: #{tpu_custom_call.1} parent=11 // pred_region
          %s555 = ssub.s32 16, 16
          %556 = vsyncadd [#allocation14], %s555
          %s558 = sshll.u32 [#allocation13], 4
          %s559 = int_to_ptr.vmem [resolvable:$true] %s558
          %561 = dma.hbm_to_vmem [thread:$0]  %s8, 16, %s559, [#allocation14]
        $region36: #{tpu_custom_call.1} parent=11 // pred_fallthru
          _
        // Predicated region
        $region37: #{tpu_custom_call.1} parent=11 // pred_check
          %p562 = pneg %p276
        $region38: #{tpu_custom_call.1} parent=11 // pred_check_branch
          %564 = sbr.rel (%p562) target = $region40
        $region39: #{tpu_custom_call.1} parent=11 // pred_region
          _
        $region40: #{tpu_custom_call.1} parent=11 // pred_fallthru
          _
        // Predicated region
        $region41: #{tpu_custom_call.1} parent=11 // pred_check
          %p565 = pneg %p297
        $region42: #{tpu_custom_call.1} parent=11 // pred_check_branch
          %567 = sbr.rel (%p565) target = $region44
        $region43: #{tpu_custom_call.1} parent=11 // pred_region
          %s569 = ssub.s32 16, 16
          %570 = vsyncadd [#allocation14], %s569
          %s572 = sshll.u32 [#allocation15], 4
          %s573 = int_to_ptr.vmem [resolvable:$true] %s572
          %575 = dma.hbm_to_vmem [thread:$0]  %s10, 16, %s573, [#allocation14]
        $region44: #{tpu_custom_call.1} parent=11 // pred_fallthru
          _
        // Predicated region
        $region45: #{tpu_custom_call.1} parent=11 // pred_check
          %p576 = pneg %p318
        $region46: #{tpu_custom_call.1} parent=11 // pred_check_branch
          %578 = sbr.rel (%p576) target = $region48
        $region47: #{tpu_custom_call.1} parent=11 // pred_region
          %s580 = ssub.s32 16, 16
          %581 = vsyncadd [#allocation17], %s580
          %s583 = sshll.u32 [#allocation16], 4
          %s584 = int_to_ptr.vmem [resolvable:$true] %s583
          %586 = dma.hbm_to_vmem [thread:$0]  %s11, 16, %s584, [#allocation17]
        $region48: #{tpu_custom_call.1} parent=11 // pred_fallthru
          _
        // Predicated region
        $region49: #{tpu_custom_call.1} parent=11 // pred_check
          %p587 = pneg %p339
        $region50: #{tpu_custom_call.1} parent=11 // pred_check_branch
          %589 = sbr.rel (%p587) target = $region52
        $region51: #{tpu_custom_call.1} parent=11 // pred_region
          %s591 = ssub.s32 16, 16
          %592 = vsyncadd [#allocation17], %s591
          %s594 = sshll.u32 [#allocation18], 4
          %s595 = int_to_ptr.vmem [resolvable:$true] %s594
          %597 = dma.hbm_to_vmem [thread:$0]  %s12, 16, %s595, [#allocation17]
        $region52: #{tpu_custom_call.1} parent=11 // pred_fallthru
          _
        // Predicated region
        $region53: #{tpu_custom_call.1} parent=11 // pred_check
          %p598 = pneg %p360
        $region54: #{tpu_custom_call.1} parent=11 // pred_check_branch
          %600 = sbr.rel (%p598) target = $region56
        $region55: #{tpu_custom_call.1} parent=11 // pred_region
          _
        $region56: #{tpu_custom_call.1} parent=11 // pred_fallthru
          _
        // Predicated region
        $region57: #{tpu_custom_call.1} parent=11 // pred_check
          %p601 = pneg %p381
        $region58: #{tpu_custom_call.1} parent=11 // pred_check_branch
          %603 = sbr.rel (%p601) target = $region60
        $region59: #{tpu_custom_call.1} parent=11 // pred_region
          _
        $region60: #{tpu_custom_call.1} parent=11 // pred_fallthru
          _
        // Predicated region
        $region61: #{tpu_custom_call.1} parent=11 // pred_check
          %p604 = pneg %p402
        $region62: #{tpu_custom_call.1} parent=11 // pred_check_branch
          %606 = sbr.rel (%p604) target = $region64
        $region63: #{tpu_custom_call.1} parent=11 // pred_region
          _
        $region64: #{tpu_custom_call.1} parent=11 // pred_fallthru
          _
        // Predicated region
        $region65: #{tpu_custom_call.1} parent=11 // pred_check
          %p607 = pneg %p423
        $region66: #{tpu_custom_call.1} parent=11 // pred_check_branch
          %609 = sbr.rel (%p607) target = $region68
        $region67: #{tpu_custom_call.1} parent=11 // pred_region
          _
        $region68: #{tpu_custom_call.1} parent=11 // pred_fallthru
          _
        // Predicated region
        $region69: #{tpu_custom_call.1} parent=11 // pred_check
          %p610 = pneg %p444
        $region70: #{tpu_custom_call.1} parent=11 // pred_check_branch
          %612 = sbr.rel (%p610) target = $region72
        $region71: #{tpu_custom_call.1} parent=11 // pred_region
          _
        $region72: #{tpu_custom_call.1} parent=11 // pred_fallthru
          _
        // Predicated region
        $region73: #{tpu_custom_call.1} parent=11 // pred_check
          %p613 = pneg %p465
        $region74: #{tpu_custom_call.1} parent=11 // pred_check_branch
          %615 = sbr.rel (%p613) target = $region76
        $region75: #{tpu_custom_call.1} parent=11 // pred_region
          _
        $region76: #{tpu_custom_call.1} parent=11 // pred_fallthru
          _
      $region12: #{tpu_custom_call.1} parent=5 // pred_fallthru
        _
      %p616 = scmp.lt.s32.totalorder %s37, 4
      // Predicated region
      $region77: #{tpu_custom_call.1} parent=5 // pred_check
        %p617 = pneg %p616
      $region78: #{tpu_custom_call.1} parent=5 // pred_check_branch
        %619 = sbr.rel (%p617) target = $region80
      $region79: #{tpu_custom_call.1} parent=5 // pred_region
        // Predicated region
        $region81: #{tpu_custom_call.1} parent=79 // pred_check
          %p620 = pneg %p71
        $region82: #{tpu_custom_call.1} parent=79 // pred_check_branch
          %622 = sbr.rel (%p620) target = $region84
        $region83: #{tpu_custom_call.1} parent=79 // pred_region
          %p623 = scmp.lt.s32.totalorder %s44, 1
          %s624 = scalar_select %p623, %s44, 1
          %p625 = scmp.lt.s32.totalorder %s45, 1
          %s626 = scalar_select %p625, %s45, 1
          %s627 = smul.addr %s624, 2
          %s628 = sadd.s32 %s626, %s627
          %s629 = smul.addr %s628, 8
          %s630 = scalar_lea.vmem %s0, %s629
        $region84: #{tpu_custom_call.1} parent=79 // pred_fallthru
          _
        // Predicated region
        $region85: #{tpu_custom_call.1} parent=79 // pred_check
          %p631 = pneg %p97
        $region86: #{tpu_custom_call.1} parent=79 // pred_check_branch
          %633 = sbr.rel (%p631) target = $region88
        $region87: #{tpu_custom_call.1} parent=79 // pred_region
          %s634 = sand.u32 %s87, 1
          %s635 = scalar_lea.sflag [#allocation5], %s634
          %s636 = sand.u32 %s87, 1
          %s637 = smul.addr %s636, 16
          %s638 = scalar_lea.vmem [#allocation4], %s637
          %s640 = ssub.s32 256, 256
          %641 = vsyncadd %s635, %s640
          %s642 = smul.addr %s44, 2
          %s643 = smul.addr %s642, 128
          %s644 = scalar_lea.hbm %s1, %s643
          %s645 = sshll.u32 %s638, 4
          %s646 = int_to_ptr.vmem [resolvable:$true] %s645
          %651 = dma.hbm_to_vmem [thread:$0]  %s644, 256, %s646, %s635, 128, 128, 8
        $region88: #{tpu_custom_call.1} parent=79 // pred_fallthru
          _
        // Predicated region
        $region89: #{tpu_custom_call.1} parent=79 // pred_check
          %p652 = pneg %p123
        $region90: #{tpu_custom_call.1} parent=79 // pred_check_branch
          %654 = sbr.rel (%p652) target = $region92
        $region91: #{tpu_custom_call.1} parent=79 // pred_region
          %s655 = sand.u32 %s37, 1
          %s656 = scalar_lea.sflag [#allocation8], %s655
          %s657 = sand.u32 %s113, 1
          %s658 = scalar_lea.vmem [#allocation7], %s657
          %s660 = ssub.s32 16, 16
          %661 = vsyncadd %s656, %s660
          %s662 = smul.addr %s44, 16
          %s663 = scalar_lea.hbm %s2, %s662
          %s665 = sshll.u32 %s658, 4
          %s666 = int_to_ptr.vmem [resolvable:$true] %s665
          %668 = dma.hbm_to_vmem [thread:$0]  %s663, 16, %s666, %s656
        $region92: #{tpu_custom_call.1} parent=79 // pred_fallthru
          _
      $region80: #{tpu_custom_call.1} parent=5 // pred_fallthru
        _
      %p669 = scmp.le.s32.totalorder 1, %s37
      %p670 = scmp.lt.s32.totalorder %s37, 5
      %p671 = pnand %p669, %p670
      %p672 = pneg %p671
      // Predicated region
      $region93: #{tpu_custom_call.1} parent=5 // pred_check
        _
      $region94: #{tpu_custom_call.1} parent=5 // pred_check_branch
        %674 = sbr.rel (%p671) target = $region96
      $region95: #{tpu_custom_call.1} parent=5 // pred_region
        %s675 = ssub.s32 %s37, 1
        %s676 = sand.u32 %s90, 1
        %s677 = scalar_lea.sflag [#allocation5], %s676
        %s678 = sand.u32 %s90, 1
        %s679 = smul.addr %s678, 16
        %s680 = scalar_lea.vmem [#allocation4], %s679
        // Predicated region
        $region97: #{tpu_custom_call.1} parent=95 // pred_check
          %p681 = pneg %p103
        $region98: #{tpu_custom_call.1} parent=95 // pred_check_branch
          %683 = sbr.rel (%p681) target = $region100
        $region99: #{tpu_custom_call.1} parent=95 // pred_region
          %684 = dma.done %s677, 256
        $region100: #{tpu_custom_call.1} parent=95 // pred_fallthru
          _
        %s685 = sand.u32 %s42, 1
        %s686 = scalar_lea.sflag [#allocation8], %s685
        %s687 = sand.u32 %s116, 1
        %s688 = scalar_lea.vmem [#allocation7], %s687
        // Predicated region
        $region101: #{tpu_custom_call.1} parent=95 // pred_check
          %p689 = pneg %p129
        $region102: #{tpu_custom_call.1} parent=95 // pred_check_branch
          %691 = sbr.rel (%p689) target = $region104
        $region103: #{tpu_custom_call.1} parent=95 // pred_region
          %692 = dma.done %s686, 16
        $region104: #{tpu_custom_call.1} parent=95 // pred_fallthru
          _
        // Predicated region
        $region105: #{tpu_custom_call.1} parent=95 // pred_check
          %p693 = pneg %p192
        $region106: #{tpu_custom_call.1} parent=95 // pred_check_branch
          %695 = sbr.rel (%p693) target = $region108
        $region107: #{tpu_custom_call.1} parent=95 // pred_region
          %696 = dma.done [#allocation8], 256
        $region108: #{tpu_custom_call.1} parent=95 // pred_fallthru
          _
        // Predicated region
        $region109: #{tpu_custom_call.1} parent=95 // pred_check
          %p697 = pneg %p213
        $region110: #{tpu_custom_call.1} parent=95 // pred_check_branch
          %699 = sbr.rel (%p697) target = $region112
        $region111: #{tpu_custom_call.1} parent=95 // pred_region
          %700 = dma.done [#allocation11], 16
        $region112: #{tpu_custom_call.1} parent=95 // pred_fallthru
          _
        // Predicated region
        $region113: #{tpu_custom_call.1} parent=95 // pred_check
          %p701 = pneg %p234
        $region114: #{tpu_custom_call.1} parent=95 // pred_check_branch
          %703 = sbr.rel (%p701) target = $region116
        $region115: #{tpu_custom_call.1} parent=95 // pred_region
          %704 = dma.done [#allocation11], 256
        $region116: #{tpu_custom_call.1} parent=95 // pred_fallthru
          _
        // Predicated region
        $region117: #{tpu_custom_call.1} parent=95 // pred_check
          %p705 = pneg %p255
        $region118: #{tpu_custom_call.1} parent=95 // pred_check_branch
          %707 = sbr.rel (%p705) target = $region120
        $region119: #{tpu_custom_call.1} parent=95 // pred_region
          %708 = dma.done [#allocation14], 16
        $region120: #{tpu_custom_call.1} parent=95 // pred_fallthru
          _
        // Predicated region
        $region121: #{tpu_custom_call.1} parent=95 // pred_check
          %p709 = pneg %p297
        $region122: #{tpu_custom_call.1} parent=95 // pred_check_branch
          %711 = sbr.rel (%p709) target = $region124
        $region123: #{tpu_custom_call.1} parent=95 // pred_region
          %712 = dma.done [#allocation14], 16
        $region124: #{tpu_custom_call.1} parent=95 // pred_fallthru
          _
        // Predicated region
        $region125: #{tpu_custom_call.1} parent=95 // pred_check
          %p713 = pneg %p318
        $region126: #{tpu_custom_call.1} parent=95 // pred_check_branch
          %715 = sbr.rel (%p713) target = $region128
        $region127: #{tpu_custom_call.1} parent=95 // pred_region
          %716 = dma.done [#allocation17], 16
        $region128: #{tpu_custom_call.1} parent=95 // pred_fallthru
          _
        // Predicated region
        $region129: #{tpu_custom_call.1} parent=95 // pred_check
          %p717 = pneg %p339
        $region130: #{tpu_custom_call.1} parent=95 // pred_check_branch
          %719 = sbr.rel (%p717) target = $region132
        $region131: #{tpu_custom_call.1} parent=95 // pred_region
          %720 = dma.done [#allocation17], 16
        $region132: #{tpu_custom_call.1} parent=95 // pred_fallthru
          _
        %p721 = scmp.lt.s32.totalorder %s46, 1
        %s722 = scalar_select %p721, %s46, 1
        %p723 = scmp.lt.s32.totalorder %s47, 1
        %s724 = scalar_select %p723, %s47, 1
        %s725 = smul.addr %s722, 2
        %s726 = sadd.s32 %s724, %s725
        %s727 = smul.addr %s726, 8
        %s728 = scalar_lea.vmem %s0, %s727
        %p729 = pneg %p77
        %p730 = pneg %p74
        %s731 = sand.u32 %s90, 1
        %s732 = scalar_lea.sflag [#allocation5], %s731
        %s733 = sand.u32 %s90, 1
        %s734 = smul.addr %s733, 16
        %s735 = scalar_lea.vmem [#allocation4], %s734
        %p736 = pneg %p103
        %p737 = pneg %p100
        %s738 = sand.u32 %s42, 1
        %s739 = scalar_lea.sflag [#allocation8], %s738
        %s740 = sand.u32 %s116, 1
        %s741 = scalar_lea.vmem [#allocation7], %s740
        %p742 = pneg %p129
        %p743 = pneg %p126
        %p744 = pneg %p150
        %p745 = pneg %p147
        %p746 = pneg %p171
        %p747 = pneg %p168
        %p748 = pneg %p192
        %p749 = pneg %p189
        %p750 = pneg %p213
        %p751 = pneg %p210
        %p752 = pneg %p234
        %p753 = pneg %p231
        %p754 = pneg %p255
        %p755 = pneg %p252
        %p756 = pneg %p276
        %p757 = pneg %p273
        %p758 = pneg %p297
        %p759 = pneg %p294
        %p760 = pneg %p318
        %p761 = pneg %p315
        %p762 = pneg %p339
        %p763 = pneg %p336
        %p764 = pneg %p360
        %p765 = pneg %p357
        %p766 = pneg %p381
        %p767 = pneg %p378
        %p768 = pneg %p402
        %p769 = pneg %p399
        %p770 = pneg %p423
        %p771 = pneg %p420
        %p772 = pneg %p444
        %p773 = pneg %p441
        %p774 = pneg %p465
        %p775 = pneg %p462
        %p776 = pneg %p493
        %p777 = pneg %p490
        %s778 = sand.u32 %s480, 1
        %s779 = scalar_lea.sflag [#allocation6], %s778
        %s780 = sand.u32 %s480, 1
        %s781 = smul.addr %s780, 8
        %s782 = scalar_lea.vmem [#allocation19], %s781
        %p783 = scmp.lt.s32.totalorder %s46, 1
        %s784 = scalar_select %p783, %s46, 1
        %p785 = scmp.lt.s32.totalorder %s47, 1
        %s786 = scalar_select %p785, %s47, 1
        %s787 = smul.addr %s784, 2
        %s788 = sadd.s32 %s786, %s787
        %s789 = smul.addr %s788, 8
        %s790 = scalar_lea.vmem %s0, %s789
        %v792 = vld [vmem:[%s790] sm:$0xff]
        %v793 = vld [vmem:[%s688] sm:$0x1]
        %p794 = scmp.eq.s32.totalorder %s47, 0
        // Predicated region
        $region133: #{tpu_custom_call.1} parent=95 // pred_check
          %p795 = pneg %p794
        $region134: #{tpu_custom_call.1} parent=95 // pred_check_branch
          %797 = sbr.rel (%p795) target = $region136
        $region135: #{tpu_custom_call.1} parent=95 // pred_region
          %v798 = vld [vmem:[%s680] sm:$0xff]
          %v799 = vld [vmem:[%s680 + $0x8] sm:$0xff]
          %v800 = vpack.c.bf16 %v799, %v798
          %v801 = vld [vmem:[#allocation9] sm:$0xf]
          %v802 = vld [vmem:[#allocation9 + $0x4] sm:$0xf]
          %v803 = vld [vmem:[#allocation9 + $0x8] sm:$0xf]
          %v804 = vld [vmem:[#allocation9 + $0xc] sm:$0xf]
          %v805 = vld [vmem:[#allocation10] sm:$0x1]
          %v807 = vlaneseq
          %v808 = vshrl.u32 %v807, 7
          %v809 = vsub.s32 0, %v808
          %v810 = vrot.slane %v805, %v809
          %v816 = vunpack.c.l.b16 %v801
          %v817 = vunpack.c.l.b16 %v802
          %v818 = vunpack.c.l.b16 %v803
          %v819 = vunpack.c.l.b16 %v804
          %v820 = vpack.c.b16 %v817, %v816
          %v821 = vpack.c.b16 %v819, %v818
          %vm824 = vcmask 261120
          %v826 = vsel %vm824, %v800, 0
          %828 = vmatprep.subr.bf16.mxu0 0
          %829 = vmatpush1.bf16.msra.mxu0 %v820
          %830 = vmatprep.subr.bf16.mxu0 0
          %831 = vmatpush1.bf16.msra.mxu0 %v821
          %832 = vmatprep.subr.bf16.mxu0 0
          %833 = vmatpush1.bf16.msra.mxu0 0
          %834 = vmatprep.subr.bf16.mxu0 0
          %835 = vmatpush1.bf16.msra.mxu0 0
          %836 = vmatprep.subr.bf16.mxu0 0
          %837 = vmatpush1.bf16.msra.mxu0 0
          %838 = vmatprep.subr.bf16.mxu0 0
          %839 = vmatpush1.bf16.msra.mxu0 0
          %840 = vmatprep.subr.bf16.mxu0 0
          %841 = vmatpush1.bf16.msra.mxu0 0
          %842 = vmatprep.subr.bf16.mxu0 0
          %843 = vmatpush1.bf16.msra.mxu0 0
          %844 = vmatprep.subr.bf16.mxu0 0
          %845 = vmatpush1.bf16.msra.mxu0 0
          %846 = vmatprep.subr.bf16.mxu0 0
          %847 = vmatpush1.bf16.msra.mxu0 0
          %848 = vmatprep.subr.bf16.mxu0 0
          %849 = vmatpush1.bf16.msra.mxu0 0
          %850 = vmatprep.subr.bf16.mxu0 0
          %851 = vmatpush1.bf16.msra.mxu0 0
          %852 = vmatprep.subr.bf16.mxu0 0
          %853 = vmatpush1.bf16.msra.mxu0 0
          %854 = vmatprep.subr.bf16.mxu0 0
          %855 = vmatpush1.bf16.msra.mxu0 0
          %856 = vmatprep.subr.bf16.mxu0 0
          %857 = vmatpush1.bf16.msra.mxu0 0
          %858 = vmatprep.subr.bf16.mxu0 0
          %859 = vmatpush1.bf16.msra.mxu0 0
          %860 = vmatprep.mubr.bf16.mxu0 0
          %861 = vmatmul.mubr.bf16.gmra.mrb[0].mxu0 %v826
          %v862 = vpop.f32.mrb[0].mxu0
          %v863 = vadd.f32 %v810, %v862
          %v864 = vpop.f32.mrb[0].mxu0
          %v865 = vpop.f32.mrb[0].mxu0
          %v866 = vadd.f32 %v810, %v865
          %v867 = vpop.f32.mrb[0].mxu0
          %868 = vdwg.mxu0
          %v869 = vld [vmem:[#allocation12] sm:$0xf]
          %v870 = vld [vmem:[#allocation12 + $0x4] sm:$0xf]
          %v871 = vld [vmem:[#allocation12 + $0x8] sm:$0xf]
          %v872 = vld [vmem:[#allocation12 + $0xc] sm:$0xf]
          %v873 = vld [vmem:[#allocation13] sm:$0x1]
          %v875 = vlaneseq
          %v876 = vshrl.u32 %v875, 7
          %v877 = vsub.s32 0, %v876
          %v878 = vrot.slane %v873, %v877
          %v884 = vunpack.c.l.b16 %v869
          %v885 = vunpack.c.l.b16 %v870
          %v886 = vunpack.c.l.b16 %v871
          %v887 = vunpack.c.l.b16 %v872
          %v888 = vpack.c.b16 %v885, %v884
          %v889 = vpack.c.b16 %v887, %v886
          %892 = vmatprep.subr.bf16.mxu0 0
          %893 = vmatpush1.bf16.msra.mxu0 %v888
          %894 = vmatprep.subr.bf16.mxu0 0
          %895 = vmatpush1.bf16.msra.mxu0 %v889
          %896 = vmatprep.subr.bf16.mxu0 0
          %897 = vmatpush1.bf16.msra.mxu0 0
          %898 = vmatprep.subr.bf16.mxu0 0
          %899 = vmatpush1.bf16.msra.mxu0 0
          %900 = vmatprep.subr.bf16.mxu0 0
          %901 = vmatpush1.bf16.msra.mxu0 0
          %902 = vmatprep.subr.bf16.mxu0 0
          %903 = vmatpush1.bf16.msra.mxu0 0
          %904 = vmatprep.subr.bf16.mxu0 0
          %905 = vmatpush1.bf16.msra.mxu0 0
          %906 = vmatprep.subr.bf16.mxu0 0
          %907 = vmatpush1.bf16.msra.mxu0 0
          %908 = vmatprep.subr.bf16.mxu0 0
          %909 = vmatpush1.bf16.msra.mxu0 0
          %910 = vmatprep.subr.bf16.mxu0 0
          %911 = vmatpush1.bf16.msra.mxu0 0
          %912 = vmatprep.subr.bf16.mxu0 0
          %913 = vmatpush1.bf16.msra.mxu0 0
          %914 = vmatprep.subr.bf16.mxu0 0
          %915 = vmatpush1.bf16.msra.mxu0 0
          %916 = vmatprep.subr.bf16.mxu0 0
          %917 = vmatpush1.bf16.msra.mxu0 0
          %918 = vmatprep.subr.bf16.mxu0 0
          %919 = vmatpush1.bf16.msra.mxu0 0
          %920 = vmatprep.subr.bf16.mxu0 0
          %921 = vmatpush1.bf16.msra.mxu0 0
          %922 = vmatprep.subr.bf16.mxu0 0
          %923 = vmatpush1.bf16.msra.mxu0 0
          %924 = vmatprep.mubr.bf16.mxu0 0
          %925 = vmatmul.mubr.bf16.gmra.mrb[0].mxu0 %v826
          %v926 = vpop.f32.mrb[0].mxu0
          %v927 = vadd.f32 %v878, %v926
          %v928 = vpop.f32.mrb[0].mxu0
          %v929 = vpop.f32.mrb[0].mxu0
          %v930 = vadd.f32 %v878, %v929
          %v931 = vpop.f32.mrb[0].mxu0
          %932 = vdwg.mxu0
          %v933 = vpack.c.bf16 %v866, %v863
          %934 = vst.msk [vmem:[#allocation2] sm:$0xff] %vm824, %v933
          %v935 = vpack.c.bf16 %v930, %v927
          %936 = vst.msk [vmem:[#allocation3] sm:$0xff] %vm824, %v935
        $region136: #{tpu_custom_call.1} parent=95 // pred_fallthru
          _
        %v937 = vpack.c.bf16 %v792, %v792
        %v938 = vld [vmem:[%s3] sm:$0xf]
        %v939 = vld [vmem:[%s3 + $0x4] sm:$0xf]
        %v940 = vld [vmem:[%s3 + $0x8] sm:$0xf]
        %v941 = vld [vmem:[%s3 + $0xc] sm:$0xf]
        %v942 = vld [vmem:[%s4] sm:$0x1]
        %v944 = vlaneseq
        %v945 = vshrl.u32 %v944, 7
        %v946 = vsub.s32 0, %v945
        %v947 = vrot.slane %v942, %v946
        %v953 = vunpack.c.l.b16 %v938
        %v954 = vunpack.c.l.b16 %v939
        %v955 = vunpack.c.l.b16 %v940
        %v956 = vunpack.c.l.b16 %v941
        %v957 = vpack.c.b16 %v954, %v953
        %v958 = vpack.c.b16 %v956, %v955
        %vm961 = vcmask 261120
        %v963 = vsel %vm961, %v937, 0
        %965 = vmatprep.subr.bf16.mxu0 0
        %966 = vmatpush1.bf16.msra.mxu0 %v957
        %967 = vmatprep.subr.bf16.mxu0 0
        %968 = vmatpush1.bf16.msra.mxu0 %v958
        %969 = vmatprep.subr.bf16.mxu0 0
        %970 = vmatpush1.bf16.msra.mxu0 0
        %971 = vmatprep.subr.bf16.mxu0 0
        %972 = vmatpush1.bf16.msra.mxu0 0
        %973 = vmatprep.subr.bf16.mxu0 0
        %974 = vmatpush1.bf16.msra.mxu0 0
        %975 = vmatprep.subr.bf16.mxu0 0
        %976 = vmatpush1.bf16.msra.mxu0 0
        %977 = vmatprep.subr.bf16.mxu0 0
        %978 = vmatpush1.bf16.msra.mxu0 0
        %979 = vmatprep.subr.bf16.mxu0 0
        %980 = vmatpush1.bf16.msra.mxu0 0
        %981 = vmatprep.subr.bf16.mxu0 0
        %982 = vmatpush1.bf16.msra.mxu0 0
        %983 = vmatprep.subr.bf16.mxu0 0
        %984 = vmatpush1.bf16.msra.mxu0 0
        %985 = vmatprep.subr.bf16.mxu0 0
        %986 = vmatpush1.bf16.msra.mxu0 0
        %987 = vmatprep.subr.bf16.mxu0 0
        %988 = vmatpush1.bf16.msra.mxu0 0
        %989 = vmatprep.subr.bf16.mxu0 0
        %990 = vmatpush1.bf16.msra.mxu0 0
        %991 = vmatprep.subr.bf16.mxu0 0
        %992 = vmatpush1.bf16.msra.mxu0 0
        %993 = vmatprep.subr.bf16.mxu0 0
        %994 = vmatpush1.bf16.msra.mxu0 0
        %995 = vmatprep.subr.bf16.mxu0 0
        %996 = vmatpush1.bf16.msra.mxu0 0
        %997 = vmatprep.mubr.bf16.mxu0 0
        %998 = vmatmul.mubr.bf16.gmra.mrb[0].mxu0 %v963
        %v999 = vpop.f32.mrb[0].mxu0
        %v1000 = vadd.f32 %v947, %v999
        %v1001 = vpop.f32.mrb[0].mxu0
        %v1002 = vpop.f32.mrb[0].mxu0
        %v1003 = vpop.f32.mrb[0].mxu0
        %1004 = vdwg.mxu0
        %v1005 = vpack.c.bf16 %v1000, %v1000
        %1007 = vrot.lane.b32.xlu0 %v1005, 120
        %v1008 = vpop.permute.xlu0 %1007
        %1009 = vrot.lane.b32.xlu0 %v1005, 112
        %v1010 = vpop.permute.xlu0 %1009
        %1011 = vrot.lane.b32.xlu0 %v1005, 104
        %v1012 = vpop.permute.xlu0 %1011
        %v1013 = vld [vmem:[#allocation2] sm:$0xff]
        %1015 = vrot.lane.b32.xlu0 %v1013, 120
        %v1016 = vpop.permute.xlu0 %1015
        %1018 = vrot.lane.b32.xlu0 %v1013, 112
        %v1019 = vpop.permute.xlu0 %1018
        %1021 = vrot.lane.b32.xlu0 %v1013, 104
        %v1022 = vpop.permute.xlu0 %1021
        %v1024 = vld [vmem:[#allocation3] sm:$0xff]
        %1026 = vrot.lane.b32.xlu0 %v1024, 120
        %v1027 = vpop.permute.xlu0 %1026
        %1029 = vrot.lane.b32.xlu0 %v1024, 112
        %v1030 = vpop.permute.xlu0 %1029
        %1032 = vrot.lane.b32.xlu0 %v1024, 104
        %v1033 = vpop.permute.xlu0 %1032
        %1035 = vxpose.xlu0.c.b16.start [1/8] %v1013, 128
        %1036 = vxpose.xlu0.c.b16.cont [2/8] 0, 128
        %1037 = vxpose.xlu0.c.b16.cont [3/8] 0, 128
        %1038 = vxpose.xlu0.c.b16.cont [4/8] 0, 128
        %1039 = vxpose.xlu0.c.b16.cont [5/8] 0, 128
        %1040 = vxpose.xlu0.c.b16.cont [6/8] 0, 128
        %1041 = vxpose.xlu0.c.b16.cont [7/8] 0, 128
        %1042 = vxpose.xlu0.c.b16.end [8/8] 0, 128
        %v1043 = vpop.trf.xlu0
        %v1044 = vpop.trf.xlu0
        %v1045 = vpop.trf.xlu0
        %v1046 = vpop.trf.xlu0
        %v1047 = vpop.trf.xlu0
        %v1048 = vpop.trf.xlu0
        %v1049 = vpop.trf.xlu0
        %v1050 = vpop.trf.xlu0
        %1051 = vxpose.xlu0.c.b16.start [1/8] %v1016, 128
        %1052 = vxpose.xlu0.c.b16.cont [2/8] 0, 128
        %1053 = vxpose.xlu0.c.b16.cont [3/8] 0, 128
        %1054 = vxpose.xlu0.c.b16.cont [4/8] 0, 128
        %1055 = vxpose.xlu0.c.b16.cont [5/8] 0, 128
        %1056 = vxpose.xlu0.c.b16.cont [6/8] 0, 128
        %1057 = vxpose.xlu0.c.b16.cont [7/8] 0, 128
        %1058 = vxpose.xlu0.c.b16.end [8/8] 0, 128
        %v1059 = vpop.trf.xlu0
        %v1060 = vpop.trf.xlu0
        %v1061 = vpop.trf.xlu0
        %v1062 = vpop.trf.xlu0
        %v1063 = vpop.trf.xlu0
        %v1064 = vpop.trf.xlu0
        %v1065 = vpop.trf.xlu0
        %v1066 = vpop.trf.xlu0
        %1067 = vxpose.xlu0.c.b16.start [1/8] %v1019, 128
        %1068 = vxpose.xlu0.c.b16.cont [2/8] 0, 128
        %1069 = vxpose.xlu0.c.b16.cont [3/8] 0, 128
        %1070 = vxpose.xlu0.c.b16.cont [4/8] 0, 128
        %1071 = vxpose.xlu0.c.b16.cont [5/8] 0, 128
        %1072 = vxpose.xlu0.c.b16.cont [6/8] 0, 128
        %1073 = vxpose.xlu0.c.b16.cont [7/8] 0, 128
        %1074 = vxpose.xlu0.c.b16.end [8/8] 0, 128
        %v1075 = vpop.trf.xlu0
        %v1076 = vpop.trf.xlu0
        %v1077 = vpop.trf.xlu0
        %v1078 = vpop.trf.xlu0
        %v1079 = vpop.trf.xlu0
        %v1080 = vpop.trf.xlu0
        %v1081 = vpop.trf.xlu0
        %v1082 = vpop.trf.xlu0
        %1083 = vxpose.xlu0.c.b16.start [1/8] %v1022, 128
        %1084 = vxpose.xlu0.c.b16.cont [2/8] 0, 128
        %1085 = vxpose.xlu0.c.b16.cont [3/8] 0, 128
        %1086 = vxpose.xlu0.c.b16.cont [4/8] 0, 128
        %1087 = vxpose.xlu0.c.b16.cont [5/8] 0, 128
        %1088 = vxpose.xlu0.c.b16.cont [6/8] 0, 128
        %1089 = vxpose.xlu0.c.b16.cont [7/8] 0, 128
        %1090 = vxpose.xlu0.c.b16.end [8/8] 0, 128
        %v1091 = vpop.trf.xlu0
        %v1092 = vpop.trf.xlu0
        %v1093 = vpop.trf.xlu0
        %v1094 = vpop.trf.xlu0
        %v1095 = vpop.trf.xlu0
        %v1096 = vpop.trf.xlu0
        %v1097 = vpop.trf.xlu0
        %v1098 = vpop.trf.xlu0
        %vm1099 = vcmask 64512
        %v1101 = vsel %vm1099, %v1005, 0
        %vm1103 = vcmask 1043456
        %v1105 = vsel %vm1103, %v1043, 0
        %1107 = vmatprep.subr.bf16.mxu0 0
        %1108 = vmatpush1.bf16.msra.mxu0 %v1105
        %1109 = vmatprep.subr.bf16.mxu0 0
        %1110 = vmatpush1.bf16.msra.mxu0 0
        %1111 = vmatprep.subr.bf16.mxu0 0
        %1112 = vmatpush1.bf16.msra.mxu0 0
        %1113 = vmatprep.subr.bf16.mxu0 0
        %1114 = vmatpush1.bf16.msra.mxu0 0
        %1115 = vmatprep.subr.bf16.mxu0 0
        %1116 = vmatpush1.bf16.msra.mxu0 0
        %1117 = vmatprep.subr.bf16.mxu0 0
        %1118 = vmatpush1.bf16.msra.mxu0 0
        %1119 = vmatprep.subr.bf16.mxu0 0
        %1120 = vmatpush1.bf16.msra.mxu0 0
        %1121 = vmatprep.subr.bf16.mxu0 0
        %1122 = vmatpush1.bf16.msra.mxu0 0
        %1123 = vmatprep.subr.bf16.mxu0 0
        %1124 = vmatpush1.bf16.msra.mxu0 0
        %1125 = vmatprep.subr.bf16.mxu0 0
        %1126 = vmatpush1.bf16.msra.mxu0 0
        %1127 = vmatprep.subr.bf16.mxu0 0
        %1128 = vmatpush1.bf16.msra.mxu0 0
        %1129 = vmatprep.subr.bf16.mxu0 0
        %1130 = vmatpush1.bf16.msra.mxu0 0
        %1131 = vmatprep.subr.bf16.mxu0 0
        %1132 = vmatpush1.bf16.msra.mxu0 0
        %1133 = vmatprep.subr.bf16.mxu0 0
        %1134 = vmatpush1.bf16.msra.mxu0 0
        %1135 = vmatprep.subr.bf16.mxu0 0
        %1136 = vmatpush1.bf16.msra.mxu0 0
        %1137 = vmatprep.subr.bf16.mxu0 0
        %1138 = vmatpush1.bf16.msra.mxu0 0
        %1139 = vmatprep.mubr.bf16.mxu0 0
        %1140 = vmatmul.mubr.bf16.gmra.mrb[0].mxu0 %v1101
        %v1141 = vpop.f32.mrb[0].mxu0
        %v1142 = vadd.f32 0.0, %v1141
        %v1143 = vpop.f32.mrb[0].mxu0
        %v1144 = vpop.f32.mrb[0].mxu0
        %v1145 = vpop.f32.mrb[0].mxu0
        %1146 = vdwg.mxu0
        %v1148 = vsel %vm1099, %v1008, 0
        %v1151 = vsel %vm1103, %v1059, 0
        %1153 = vmatprep.subr.bf16.mxu0 0
        %1154 = vmatpush1.bf16.msra.mxu0 %v1151
        %1155 = vmatprep.subr.bf16.mxu0 0
        %1156 = vmatpush1.bf16.msra.mxu0 0
        %1157 = vmatprep.subr.bf16.mxu0 0
        %1158 = vmatpush1.bf16.msra.mxu0 0
        %1159 = vmatprep.subr.bf16.mxu0 0
        %1160 = vmatpush1.bf16.msra.mxu0 0
        %1161 = vmatprep.subr.bf16.mxu0 0
        %1162 = vmatpush1.bf16.msra.mxu0 0
        %1163 = vmatprep.subr.bf16.mxu0 0
        %1164 = vmatpush1.bf16.msra.mxu0 0
        %1165 = vmatprep.subr.bf16.mxu0 0
        %1166 = vmatpush1.bf16.msra.mxu0 0
        %1167 = vmatprep.subr.bf16.mxu0 0
        %1168 = vmatpush1.bf16.msra.mxu0 0
        %1169 = vmatprep.subr.bf16.mxu0 0
        %1170 = vmatpush1.bf16.msra.mxu0 0
        %1171 = vmatprep.subr.bf16.mxu0 0
        %1172 = vmatpush1.bf16.msra.mxu0 0
        %1173 = vmatprep.subr.bf16.mxu0 0
        %1174 = vmatpush1.bf16.msra.mxu0 0
        %1175 = vmatprep.subr.bf16.mxu0 0
        %1176 = vmatpush1.bf16.msra.mxu0 0
        %1177 = vmatprep.subr.bf16.mxu0 0
        %1178 = vmatpush1.bf16.msra.mxu0 0
        %1179 = vmatprep.subr.bf16.mxu0 0
        %1180 = vmatpush1.bf16.msra.mxu0 0
        %1181 = vmatprep.subr.bf16.mxu0 0
        %1182 = vmatpush1.bf16.msra.mxu0 0
        %1183 = vmatprep.subr.bf16.mxu0 0
        %1184 = vmatpush1.bf16.msra.mxu0 0
        %1185 = vmatprep.mubr.bf16.mxu0 0
        %1186 = vmatmul.mubr.bf16.gmra.mrb[0].mxu0 %v1148
        %v1187 = vpop.f32.mrb[0].mxu0
        %v1188 = vadd.f32 0.0, %v1187
        %v1189 = vpop.f32.mrb[0].mxu0
        %v1190 = vpop.f32.mrb[0].mxu0
        %v1191 = vpop.f32.mrb[0].mxu0
        %1192 = vdwg.mxu0
        %v1194 = vsel %vm1099, %v1010, 0
        %v1197 = vsel %vm1103, %v1075, 0
        %1199 = vmatprep.subr.bf16.mxu0 0
        %1200 = vmatpush1.bf16.msra.mxu0 %v1197
        %1201 = vmatprep.subr.bf16.mxu0 0
        %1202 = vmatpush1.bf16.msra.mxu0 0
        %1203 = vmatprep.subr.bf16.mxu0 0
        %1204 = vmatpush1.bf16.msra.mxu0 0
        %1205 = vmatprep.subr.bf16.mxu0 0
        %1206 = vmatpush1.bf16.msra.mxu0 0
        %1207 = vmatprep.subr.bf16.mxu0 0
        %1208 = vmatpush1.bf16.msra.mxu0 0
        %1209 = vmatprep.subr.bf16.mxu0 0
        %1210 = vmatpush1.bf16.msra.mxu0 0
        %1211 = vmatprep.subr.bf16.mxu0 0
        %1212 = vmatpush1.bf16.msra.mxu0 0
        %1213 = vmatprep.subr.bf16.mxu0 0
        %1214 = vmatpush1.bf16.msra.mxu0 0
        %1215 = vmatprep.subr.bf16.mxu0 0
        %1216 = vmatpush1.bf16.msra.mxu0 0
        %1217 = vmatprep.subr.bf16.mxu0 0
        %1218 = vmatpush1.bf16.msra.mxu0 0
        %1219 = vmatprep.subr.bf16.mxu0 0
        %1220 = vmatpush1.bf16.msra.mxu0 0
        %1221 = vmatprep.subr.bf16.mxu0 0
        %1222 = vmatpush1.bf16.msra.mxu0 0
        %1223 = vmatprep.subr.bf16.mxu0 0
        %1224 = vmatpush1.bf16.msra.mxu0 0
        %1225 = vmatprep.subr.bf16.mxu0 0
        %1226 = vmatpush1.bf16.msra.mxu0 0
        %1227 = vmatprep.subr.bf16.mxu0 0
        %1228 = vmatpush1.bf16.msra.mxu0 0
        %1229 = vmatprep.subr.bf16.mxu0 0
        %1230 = vmatpush1.bf16.msra.mxu0 0
        %1231 = vmatprep.mubr.bf16.mxu0 0
        %1232 = vmatmul.mubr.bf16.gmra.mrb[0].mxu0 %v1194
        %v1233 = vpop.f32.mrb[0].mxu0
        %v1234 = vadd.f32 0.0, %v1233
        %v1235 = vpop.f32.mrb[0].mxu0
        %v1236 = vpop.f32.mrb[0].mxu0
        %v1237 = vpop.f32.mrb[0].mxu0
        %1238 = vdwg.mxu0
        %v1240 = vsel %vm1099, %v1012, 0
        %v1243 = vsel %vm1103, %v1091, 0
        %1245 = vmatprep.subr.bf16.mxu0 0
        %1246 = vmatpush1.bf16.msra.mxu0 %v1243
        %1247 = vmatprep.subr.bf16.mxu0 0
        %1248 = vmatpush1.bf16.msra.mxu0 0
        %1249 = vmatprep.subr.bf16.mxu0 0
        %1250 = vmatpush1.bf16.msra.mxu0 0
        %1251 = vmatprep.subr.bf16.mxu0 0
        %1252 = vmatpush1.bf16.msra.mxu0 0
        %1253 = vmatprep.subr.bf16.mxu0 0
        %1254 = vmatpush1.bf16.msra.mxu0 0
        %1255 = vmatprep.subr.bf16.mxu0 0
        %1256 = vmatpush1.bf16.msra.mxu0 0
        %1257 = vmatprep.subr.bf16.mxu0 0
        %1258 = vmatpush1.bf16.msra.mxu0 0
        %1259 = vmatprep.subr.bf16.mxu0 0
        %1260 = vmatpush1.bf16.msra.mxu0 0
        %1261 = vmatprep.subr.bf16.mxu0 0
        %1262 = vmatpush1.bf16.msra.mxu0 0
        %1263 = vmatprep.subr.bf16.mxu0 0
        %1264 = vmatpush1.bf16.msra.mxu0 0
        %1265 = vmatprep.subr.bf16.mxu0 0
        %1266 = vmatpush1.bf16.msra.mxu0 0
        %1267 = vmatprep.subr.bf16.mxu0 0
        %1268 = vmatpush1.bf16.msra.mxu0 0
        %1269 = vmatprep.subr.bf16.mxu0 0
        %1270 = vmatpush1.bf16.msra.mxu0 0
        %1271 = vmatprep.subr.bf16.mxu0 0
        %1272 = vmatpush1.bf16.msra.mxu0 0
        %1273 = vmatprep.subr.bf16.mxu0 0
        %1274 = vmatpush1.bf16.msra.mxu0 0
        %1275 = vmatprep.subr.bf16.mxu0 0
        %1276 = vmatpush1.bf16.msra.mxu0 0
        %1277 = vmatprep.mubr.bf16.mxu0 0
        %1278 = vmatmul.mubr.bf16.gmra.mrb[0].mxu0 %v1240
        %v1279 = vpop.f32.mrb[0].mxu0
        %v1280 = vadd.f32 0.0, %v1279
        %v1281 = vpop.f32.mrb[0].mxu0
        %v1282 = vpop.f32.mrb[0].mxu0
        %v1283 = vpop.f32.mrb[0].mxu0
        %1284 = vdwg.mxu0
        %v1285 = vmul.f32 %v1142, 0.35355338
        %v1286 = vmul.f32 %v1188, 0.35355338
        %v1287 = vmul.f32 %v1234, 0.35355338
        %v1288 = vmul.f32 %v1280, 0.35355338
        %v1290 = vlaneseq
        %v1291 = vshrl.u32 %v1290, 7
        %v1292 = vsub.s32 0, %v1291
        %v1293 = vrot.slane %v793, %v1292
        %v1295 = vadd.f32 %v1285, %v1293
        %v1296 = vadd.f32 %v1286, %v1293
        %v1297 = vadd.f32 %v1287, %v1293
        %v1298 = vadd.f32 %v1288, %v1293
        %vm1299 = vcmask 130048
        %v1300 = vsel %vm1299, %v1295, -inf
        %1301 = vmax.xlane.f32.xlu0 %v1300
        %v1302 = vpop.xlane.xlu0 %1301
        %v1303 = vsel %vm1299, %v1296, -inf
        %1304 = vmax.xlane.f32.xlu0 %v1303
        %v1305 = vpop.xlane.xlu0 %1304
        %v1306 = vsel %vm1299, %v1297, -inf
        %1307 = vmax.xlane.f32.xlu0 %v1306
        %v1308 = vpop.xlane.xlu0 %1307
        %v1309 = vsel %vm1299, %v1298, -inf
        %1310 = vmax.xlane.f32.xlu0 %v1309
        %v1311 = vpop.xlane.xlu0 %1310
        %v1312 = vsub.f32 %v1295, %v1302
        %v1313 = vsub.f32 %v1296, %v1305
        %v1314 = vsub.f32 %v1297, %v1308
        %v1315 = vsub.f32 %v1298, %v1311
        %v1316 = vmul.f32 %v1312, 1.442695
        %v1317 = vpow.pop %v1316
        %v1318 = vmul.f32 %v1313, 1.442695
        %v1319 = vpow.pop %v1318
        %v1320 = vmul.f32 %v1314, 1.442695
        %v1321 = vpow.pop %v1320
        %v1322 = vmul.f32 %v1315, 1.442695
        %v1323 = vpow.pop %v1322
        %v1324 = vsel %vm1299, %v1317, 0.0
        %1325 = vadd.xlane.f32.xlu0 %v1324
        %v1326 = vpop.xlane.xlu0 %1325
        %v1327 = vsel %vm1299, %v1319, 0.0
        %1328 = vadd.xlane.f32.xlu0 %v1327
        %v1329 = vpop.xlane.xlu0 %1328
        %v1330 = vsel %vm1299, %v1321, 0.0
        %1331 = vadd.xlane.f32.xlu0 %v1330
        %v1332 = vpop.xlane.xlu0 %1331
        %v1333 = vsel %vm1299, %v1323, 0.0
        %1334 = vadd.xlane.f32.xlu0 %v1333
        %v1335 = vpop.xlane.xlu0 %1334
        %v1336 = vrcp.pop %v1326
        %v1337 = vrcp.pop %v1329
        %v1338 = vrcp.pop %v1332
        %v1339 = vrcp.pop %v1335
        %v1340 = vmul.f32 %v1317, %v1336
        %v1341 = vmul.f32 %v1319, %v1337
        %v1342 = vmul.f32 %v1321, %v1338
        %v1343 = vmul.f32 %v1323, %v1339
        %v1344 = vpack.c.bf16 %v1340, %v1340
        %v1345 = vpack.c.bf16 %v1341, %v1341
        %v1346 = vpack.c.bf16 %v1342, %v1342
        %v1347 = vpack.c.bf16 %v1343, %v1343
        %1348 = vxpose.xlu0.c.b16.start [1/8] %v1024, 128
        %1349 = vxpose.xlu0.c.b16.cont [2/8] 0, 128
        %1350 = vxpose.xlu0.c.b16.cont [3/8] 0, 128
        %1351 = vxpose.xlu0.c.b16.cont [4/8] 0, 128
        %1352 = vxpose.xlu0.c.b16.cont [5/8] 0, 128
        %1353 = vxpose.xlu0.c.b16.cont [6/8] 0, 128
        %1354 = vxpose.xlu0.c.b16.cont [7/8] 0, 128
        %1355 = vxpose.xlu0.c.b16.end [8/8] 0, 128
        %v1356 = vpop.trf.xlu0
        %v1357 = vpop.trf.xlu0
        %v1358 = vpop.trf.xlu0
        %v1359 = vpop.trf.xlu0
        %v1360 = vpop.trf.xlu0
        %v1361 = vpop.trf.xlu0
        %v1362 = vpop.trf.xlu0
        %v1363 = vpop.trf.xlu0
        %1364 = vxpose.xlu0.c.b16.start [1/8] %v1027, 128
        %1365 = vxpose.xlu0.c.b16.cont [2/8] 0, 128
        %1366 = vxpose.xlu0.c.b16.cont [3/8] 0, 128
        %1367 = vxpose.xlu0.c.b16.cont [4/8] 0, 128
        %1368 = vxpose.xlu0.c.b16.cont [5/8] 0, 128
        %1369 = vxpose.xlu0.c.b16.cont [6/8] 0, 128
        %1370 = vxpose.xlu0.c.b16.cont [7/8] 0, 128
        %1371 = vxpose.xlu0.c.b16.end [8/8] 0, 128
        %v1372 = vpop.trf.xlu0
        %v1373 = vpop.trf.xlu0
        %v1374 = vpop.trf.xlu0
        %v1375 = vpop.trf.xlu0
        %v1376 = vpop.trf.xlu0
        %v1377 = vpop.trf.xlu0
        %v1378 = vpop.trf.xlu0
        %v1379 = vpop.trf.xlu0
        %1380 = vxpose.xlu0.c.b16.start [1/8] %v1030, 128
        %1381 = vxpose.xlu0.c.b16.cont [2/8] 0, 128
        %1382 = vxpose.xlu0.c.b16.cont [3/8] 0, 128
        %1383 = vxpose.xlu0.c.b16.cont [4/8] 0, 128
        %1384 = vxpose.xlu0.c.b16.cont [5/8] 0, 128
        %1385 = vxpose.xlu0.c.b16.cont [6/8] 0, 128
        %1386 = vxpose.xlu0.c.b16.cont [7/8] 0, 128
        %1387 = vxpose.xlu0.c.b16.end [8/8] 0, 128
        %v1388 = vpop.trf.xlu0
        %v1389 = vpop.trf.xlu0
        %v1390 = vpop.trf.xlu0
        %v1391 = vpop.trf.xlu0
        %v1392 = vpop.trf.xlu0
        %v1393 = vpop.trf.xlu0
        %v1394 = vpop.trf.xlu0
        %v1395 = vpop.trf.xlu0
        %1396 = vxpose.xlu0.c.b16.start [1/8] %v1033, 128
        %1397 = vxpose.xlu0.c.b16.cont [2/8] 0, 128
        %1398 = vxpose.xlu0.c.b16.cont [3/8] 0, 128
        %1399 = vxpose.xlu0.c.b16.cont [4/8] 0, 128
        %1400 = vxpose.xlu0.c.b16.cont [5/8] 0, 128
        %1401 = vxpose.xlu0.c.b16.cont [6/8] 0, 128
        %1402 = vxpose.xlu0.c.b16.cont [7/8] 0, 128
        %1403 = vxpose.xlu0.c.b16.end [8/8] 0, 128
        %v1404 = vpop.trf.xlu0
        %v1405 = vpop.trf.xlu0
        %v1406 = vpop.trf.xlu0
        %v1407 = vpop.trf.xlu0
        %v1408 = vpop.trf.xlu0
        %v1409 = vpop.trf.xlu0
        %v1410 = vpop.trf.xlu0
        %v1411 = vpop.trf.xlu0
        %v1413 = vsel %vm1299, %v1356, 0
        %v1416 = vsel %vm1299, %v1344, 0
        %1418 = vmatprep.subr.bf16.mxu0 0
        %1419 = vmatpush1.bf16.xpose.msra.mxu0 %v1416
        %1420 = vmatprep.subr.bf16.mxu0 0
        %1421 = vmatpush1.bf16.xpose.msra.mxu0 0
        %1422 = vmatprep.subr.bf16.mxu0 0
        %1423 = vmatpush1.bf16.xpose.msra.mxu0 0
        %1424 = vmatprep.subr.bf16.mxu0 0
        %1425 = vmatpush1.bf16.xpose.msra.mxu0 0
        %1426 = vmatprep.subr.bf16.mxu0 0
        %1427 = vmatpush1.bf16.xpose.msra.mxu0 0
        %1428 = vmatprep.subr.bf16.mxu0 0
        %1429 = vmatpush1.bf16.xpose.msra.mxu0 0
        %1430 = vmatprep.subr.bf16.mxu0 0
        %1431 = vmatpush1.bf16.xpose.msra.mxu0 0
        %1432 = vmatprep.subr.bf16.mxu0 0
        %1433 = vmatpush1.bf16.xpose.msra.mxu0 0
        %1434 = vmatprep.subr.bf16.mxu0 0
        %1435 = vmatpush1.bf16.xpose.msra.mxu0 0
        %1436 = vmatprep.subr.bf16.mxu0 0
        %1437 = vmatpush1.bf16.xpose.msra.mxu0 0
        %1438 = vmatprep.subr.bf16.mxu0 0
        %1439 = vmatpush1.bf16.xpose.msra.mxu0 0
        %1440 = vmatprep.subr.bf16.mxu0 0
        %1441 = vmatpush1.bf16.xpose.msra.mxu0 0
        %1442 = vmatprep.subr.bf16.mxu0 0
        %1443 = vmatpush1.bf16.xpose.msra.mxu0 0
        %1444 = vmatprep.subr.bf16.mxu0 0
        %1445 = vmatpush1.bf16.xpose.msra.mxu0 0
        %1446 = vmatprep.subr.bf16.mxu0 0
        %1447 = vmatpush1.bf16.xpose.msra.mxu0 0
        %1448 = vmatprep.subr.bf16.mxu0 0
        %1449 = vmatpush1.bf16.xpose.msra.mxu0 0
        %1450 = vmatprep.mubr.bf16.mxu0 0
        %1451 = vmatmul.mubr.bf16.gmra.mrb[0].mxu0 %v1413
        %v1452 = vpop.f32.mrb[0].mxu0
        %v1453 = vadd.f32 0.0, %v1452
        %v1454 = vpop.f32.mrb[0].mxu0
        %v1455 = vpop.f32.mrb[0].mxu0
        %v1456 = vpop.f32.mrb[0].mxu0
        %1457 = vdwg.mxu0
        %v1459 = vsel %vm1299, %v1372, 0
        %v1462 = vsel %vm1299, %v1345, 0
        %1464 = vmatprep.subr.bf16.mxu0 0
        %1465 = vmatpush1.bf16.xpose.msra.mxu0 %v1462
        %1466 = vmatprep.subr.bf16.mxu0 0
        %1467 = vmatpush1.bf16.xpose.msra.mxu0 0
        %1468 = vmatprep.subr.bf16.mxu0 0
        %1469 = vmatpush1.bf16.xpose.msra.mxu0 0
        %1470 = vmatprep.subr.bf16.mxu0 0
        %1471 = vmatpush1.bf16.xpose.msra.mxu0 0
        %1472 = vmatprep.subr.bf16.mxu0 0
        %1473 = vmatpush1.bf16.xpose.msra.mxu0 0
        %1474 = vmatprep.subr.bf16.mxu0 0
        %1475 = vmatpush1.bf16.xpose.msra.mxu0 0
        %1476 = vmatprep.subr.bf16.mxu0 0
        %1477 = vmatpush1.bf16.xpose.msra.mxu0 0
        %1478 = vmatprep.subr.bf16.mxu0 0
        %1479 = vmatpush1.bf16.xpose.msra.mxu0 0
        %1480 = vmatprep.subr.bf16.mxu0 0
        %1481 = vmatpush1.bf16.xpose.msra.mxu0 0
        %1482 = vmatprep.subr.bf16.mxu0 0
        %1483 = vmatpush1.bf16.xpose.msra.mxu0 0
        %1484 = vmatprep.subr.bf16.mxu0 0
        %1485 = vmatpush1.bf16.xpose.msra.mxu0 0
        %1486 = vmatprep.subr.bf16.mxu0 0
        %1487 = vmatpush1.bf16.xpose.msra.mxu0 0
        %1488 = vmatprep.subr.bf16.mxu0 0
        %1489 = vmatpush1.bf16.xpose.msra.mxu0 0
        %1490 = vmatprep.subr.bf16.mxu0 0
        %1491 = vmatpush1.bf16.xpose.msra.mxu0 0
        %1492 = vmatprep.subr.bf16.mxu0 0
        %1493 = vmatpush1.bf16.xpose.msra.mxu0 0
        %1494 = vmatprep.subr.bf16.mxu0 0
        %1495 = vmatpush1.bf16.xpose.msra.mxu0 0
        %1496 = vmatprep.mubr.bf16.mxu0 0
        %1497 = vmatmul.mubr.bf16.gmra.mrb[0].mxu0 %v1459
        %v1498 = vpop.f32.mrb[0].mxu0
        %v1499 = vadd.f32 0.0, %v1498
        %v1500 = vpop.f32.mrb[0].mxu0
        %v1501 = vpop.f32.mrb[0].mxu0
        %v1502 = vpop.f32.mrb[0].mxu0
        %1503 = vdwg.mxu0
        %v1505 = vsel %vm1299, %v1388, 0
        %v1508 = vsel %vm1299, %v1346, 0
        %1510 = vmatprep.subr.bf16.mxu0 0
        %1511 = vmatpush1.bf16.xpose.msra.mxu0 %v1508
        %1512 = vmatprep.subr.bf16.mxu0 0
        %1513 = vmatpush1.bf16.xpose.msra.mxu0 0
        %1514 = vmatprep.subr.bf16.mxu0 0
        %1515 = vmatpush1.bf16.xpose.msra.mxu0 0
        %1516 = vmatprep.subr.bf16.mxu0 0
        %1517 = vmatpush1.bf16.xpose.msra.mxu0 0
        %1518 = vmatprep.subr.bf16.mxu0 0
        %1519 = vmatpush1.bf16.xpose.msra.mxu0 0
        %1520 = vmatprep.subr.bf16.mxu0 0
        %1521 = vmatpush1.bf16.xpose.msra.mxu0 0
        %1522 = vmatprep.subr.bf16.mxu0 0
        %1523 = vmatpush1.bf16.xpose.msra.mxu0 0
        %1524 = vmatprep.subr.bf16.mxu0 0
        %1525 = vmatpush1.bf16.xpose.msra.mxu0 0
        %1526 = vmatprep.subr.bf16.mxu0 0
        %1527 = vmatpush1.bf16.xpose.msra.mxu0 0
        %1528 = vmatprep.subr.bf16.mxu0 0
        %1529 = vmatpush1.bf16.xpose.msra.mxu0 0
        %1530 = vmatprep.subr.bf16.mxu0 0
        %1531 = vmatpush1.bf16.xpose.msra.mxu0 0
        %1532 = vmatprep.subr.bf16.mxu0 0
        %1533 = vmatpush1.bf16.xpose.msra.mxu0 0
        %1534 = vmatprep.subr.bf16.mxu0 0
        %1535 = vmatpush1.bf16.xpose.msra.mxu0 0
        %1536 = vmatprep.subr.bf16.mxu0 0
        %1537 = vmatpush1.bf16.xpose.msra.mxu0 0
        %1538 = vmatprep.subr.bf16.mxu0 0
        %1539 = vmatpush1.bf16.xpose.msra.mxu0 0
        %1540 = vmatprep.subr.bf16.mxu0 0
        %1541 = vmatpush1.bf16.xpose.msra.mxu0 0
        %1542 = vmatprep.mubr.bf16.mxu0 0
        %1543 = vmatmul.mubr.bf16.gmra.mrb[0].mxu0 %v1505
        %v1544 = vpop.f32.mrb[0].mxu0
        %v1545 = vadd.f32 0.0, %v1544
        %v1546 = vpop.f32.mrb[0].mxu0
        %v1547 = vpop.f32.mrb[0].mxu0
        %v1548 = vpop.f32.mrb[0].mxu0
        %1549 = vdwg.mxu0
        %v1551 = vsel %vm1299, %v1404, 0
        %v1554 = vsel %vm1299, %v1347, 0
        %1556 = vmatprep.subr.bf16.mxu0 0
        %1557 = vmatpush1.bf16.xpose.msra.mxu0 %v1554
        %1558 = vmatprep.subr.bf16.mxu0 0
        %1559 = vmatpush1.bf16.xpose.msra.mxu0 0
        %1560 = vmatprep.subr.bf16.mxu0 0
        %1561 = vmatpush1.bf16.xpose.msra.mxu0 0
        %1562 = vmatprep.subr.bf16.mxu0 0
        %1563 = vmatpush1.bf16.xpose.msra.mxu0 0
        %1564 = vmatprep.subr.bf16.mxu0 0
        %1565 = vmatpush1.bf16.xpose.msra.mxu0 0
        %1566 = vmatprep.subr.bf16.mxu0 0
        %1567 = vmatpush1.bf16.xpose.msra.mxu0 0
        %1568 = vmatprep.subr.bf16.mxu0 0
        %1569 = vmatpush1.bf16.xpose.msra.mxu0 0
        %1570 = vmatprep.subr.bf16.mxu0 0
        %1571 = vmatpush1.bf16.xpose.msra.mxu0 0
        %1572 = vmatprep.subr.bf16.mxu0 0
        %1573 = vmatpush1.bf16.xpose.msra.mxu0 0
        %1574 = vmatprep.subr.bf16.mxu0 0
        %1575 = vmatpush1.bf16.xpose.msra.mxu0 0
        %1576 = vmatprep.subr.bf16.mxu0 0
        %1577 = vmatpush1.bf16.xpose.msra.mxu0 0
        %1578 = vmatprep.subr.bf16.mxu0 0
        %1579 = vmatpush1.bf16.xpose.msra.mxu0 0
        %1580 = vmatprep.subr.bf16.mxu0 0
        %1581 = vmatpush1.bf16.xpose.msra.mxu0 0
        %1582 = vmatprep.subr.bf16.mxu0 0
        %1583 = vmatpush1.bf16.xpose.msra.mxu0 0
        %1584 = vmatprep.subr.bf16.mxu0 0
        %1585 = vmatpush1.bf16.xpose.msra.mxu0 0
        %1586 = vmatprep.subr.bf16.mxu0 0
        %1587 = vmatpush1.bf16.xpose.msra.mxu0 0
        %1588 = vmatprep.mubr.bf16.mxu0 0
        %1589 = vmatmul.mubr.bf16.gmra.mrb[0].mxu0 %v1551
        %v1590 = vpop.f32.mrb[0].mxu0
        %v1591 = vadd.f32 0.0, %v1590
        %v1592 = vpop.f32.mrb[0].mxu0
        %v1593 = vpop.f32.mrb[0].mxu0
        %v1594 = vpop.f32.mrb[0].mxu0
        %1595 = vdwg.mxu0
        %1596 = vxpose.xlu0.b32.start [1/16] %v1453, 128
        %1597 = vxpose.xlu0.b32.cont [2/16] 0.0, 128
        %1598 = vxpose.xlu0.b32.cont [3/16] 0.0, 128
        %1599 = vxpose.xlu0.b32.cont [4/16] 0.0, 128
        %1600 = vxpose.xlu0.b32.cont [5/16] 0.0, 128
        %1601 = vxpose.xlu0.b32.cont [6/16] 0.0, 128
        %1602 = vxpose.xlu0.b32.cont [7/16] 0.0, 128
        %1603 = vxpose.xlu0.b32.cont [8/16] 0.0, 128
        %1604 = vxpose.xlu0.b32.cont [9/16] 0.0, 128
        %1605 = vxpose.xlu0.b32.cont [10/16] 0.0, 128
        %1606 = vxpose.xlu0.b32.cont [11/16] 0.0, 128
        %1607 = vxpose.xlu0.b32.cont [12/16] 0.0, 128
        %1608 = vxpose.xlu0.b32.cont [13/16] 0.0, 128
        %1609 = vxpose.xlu0.b32.cont [14/16] 0.0, 128
        %1610 = vxpose.xlu0.b32.cont [15/16] 0.0, 128
        %1611 = vxpose.xlu0.b32.end [16/16] 0.0, 128
        %v1612 = vpop.trf.xlu0
        %v1613 = vpop.trf.xlu0
        %v1614 = vpop.trf.xlu0
        %v1615 = vpop.trf.xlu0
        %v1616 = vpop.trf.xlu0
        %v1617 = vpop.trf.xlu0
        %v1618 = vpop.trf.xlu0
        %v1619 = vpop.trf.xlu0
        %v1620 = vpop.trf.xlu0
        %v1621 = vpop.trf.xlu0
        %v1622 = vpop.trf.xlu0
        %v1623 = vpop.trf.xlu0
        %v1624 = vpop.trf.xlu0
        %v1625 = vpop.trf.xlu0
        %v1626 = vpop.trf.xlu0
        %v1627 = vpop.trf.xlu0
        %1628 = vxpose.xlu0.b32.start [1/16] %v1499, 128
        %1629 = vxpose.xlu0.b32.cont [2/16] 0.0, 128
        %1630 = vxpose.xlu0.b32.cont [3/16] 0.0, 128
        %1631 = vxpose.xlu0.b32.cont [4/16] 0.0, 128
        %1632 = vxpose.xlu0.b32.cont [5/16] 0.0, 128
        %1633 = vxpose.xlu0.b32.cont [6/16] 0.0, 128
        %1634 = vxpose.xlu0.b32.cont [7/16] 0.0, 128
        %1635 = vxpose.xlu0.b32.cont [8/16] 0.0, 128
        %1636 = vxpose.xlu0.b32.cont [9/16] 0.0, 128
        %1637 = vxpose.xlu0.b32.cont [10/16] 0.0, 128
        %1638 = vxpose.xlu0.b32.cont [11/16] 0.0, 128
        %1639 = vxpose.xlu0.b32.cont [12/16] 0.0, 128
        %1640 = vxpose.xlu0.b32.cont [13/16] 0.0, 128
        %1641 = vxpose.xlu0.b32.cont [14/16] 0.0, 128
        %1642 = vxpose.xlu0.b32.cont [15/16] 0.0, 128
        %1643 = vxpose.xlu0.b32.end [16/16] 0.0, 128
        %v1644 = vpop.trf.xlu0
        %v1645 = vpop.trf.xlu0
        %v1646 = vpop.trf.xlu0
        %v1647 = vpop.trf.xlu0
        %v1648 = vpop.trf.xlu0
        %v1649 = vpop.trf.xlu0
        %v1650 = vpop.trf.xlu0
        %v1651 = vpop.trf.xlu0
        %v1652 = vpop.trf.xlu0
        %v1653 = vpop.trf.xlu0
        %v1654 = vpop.trf.xlu0
        %v1655 = vpop.trf.xlu0
        %v1656 = vpop.trf.xlu0
        %v1657 = vpop.trf.xlu0
        %v1658 = vpop.trf.xlu0
        %v1659 = vpop.trf.xlu0
        %1660 = vxpose.xlu0.b32.start [1/16] %v1545, 128
        %1661 = vxpose.xlu0.b32.cont [2/16] 0.0, 128
        %1662 = vxpose.xlu0.b32.cont [3/16] 0.0, 128
        %1663 = vxpose.xlu0.b32.cont [4/16] 0.0, 128
        %1664 = vxpose.xlu0.b32.cont [5/16] 0.0, 128
        %1665 = vxpose.xlu0.b32.cont [6/16] 0.0, 128
        %1666 = vxpose.xlu0.b32.cont [7/16] 0.0, 128
        %1667 = vxpose.xlu0.b32.cont [8/16] 0.0, 128
        %1668 = vxpose.xlu0.b32.cont [9/16] 0.0, 128
        %1669 = vxpose.xlu0.b32.cont [10/16] 0.0, 128
        %1670 = vxpose.xlu0.b32.cont [11/16] 0.0, 128
        %1671 = vxpose.xlu0.b32.cont [12/16] 0.0, 128
        %1672 = vxpose.xlu0.b32.cont [13/16] 0.0, 128
        %1673 = vxpose.xlu0.b32.cont [14/16] 0.0, 128
        %1674 = vxpose.xlu0.b32.cont [15/16] 0.0, 128
        %1675 = vxpose.xlu0.b32.end [16/16] 0.0, 128
        %v1676 = vpop.trf.xlu0
        %v1677 = vpop.trf.xlu0
        %v1678 = vpop.trf.xlu0
        %v1679 = vpop.trf.xlu0
        %v1680 = vpop.trf.xlu0
        %v1681 = vpop.trf.xlu0
        %v1682 = vpop.trf.xlu0
        %v1683 = vpop.trf.xlu0
        %v1684 = vpop.trf.xlu0
        %v1685 = vpop.trf.xlu0
        %v1686 = vpop.trf.xlu0
        %v1687 = vpop.trf.xlu0
        %v1688 = vpop.trf.xlu0
        %v1689 = vpop.trf.xlu0
        %v1690 = vpop.trf.xlu0
        %v1691 = vpop.trf.xlu0
        %1692 = vxpose.xlu0.b32.start [1/16] %v1591, 128
        %1693 = vxpose.xlu0.b32.cont [2/16] 0.0, 128
        %1694 = vxpose.xlu0.b32.cont [3/16] 0.0, 128
        %1695 = vxpose.xlu0.b32.cont [4/16] 0.0, 128
        %1696 = vxpose.xlu0.b32.cont [5/16] 0.0, 128
        %1697 = vxpose.xlu0.b32.cont [6/16] 0.0, 128
        %1698 = vxpose.xlu0.b32.cont [7/16] 0.0, 128
        %1699 = vxpose.xlu0.b32.cont [8/16] 0.0, 128
        %1700 = vxpose.xlu0.b32.cont [9/16] 0.0, 128
        %1701 = vxpose.xlu0.b32.cont [10/16] 0.0, 128
        %1702 = vxpose.xlu0.b32.cont [11/16] 0.0, 128
        %1703 = vxpose.xlu0.b32.cont [12/16] 0.0, 128
        %1704 = vxpose.xlu0.b32.cont [13/16] 0.0, 128
        %1705 = vxpose.xlu0.b32.cont [14/16] 0.0, 128
        %1706 = vxpose.xlu0.b32.cont [15/16] 0.0, 128
        %1707 = vxpose.xlu0.b32.end [16/16] 0.0, 128
        %v1708 = vpop.trf.xlu0
        %v1709 = vpop.trf.xlu0
        %v1710 = vpop.trf.xlu0
        %v1711 = vpop.trf.xlu0
        %v1712 = vpop.trf.xlu0
        %v1713 = vpop.trf.xlu0
        %v1714 = vpop.trf.xlu0
        %v1715 = vpop.trf.xlu0
        %v1716 = vpop.trf.xlu0
        %v1717 = vpop.trf.xlu0
        %v1718 = vpop.trf.xlu0
        %v1719 = vpop.trf.xlu0
        %v1720 = vpop.trf.xlu0
        %v1721 = vpop.trf.xlu0
        %v1722 = vpop.trf.xlu0
        %v1723 = vpop.trf.xlu0
        %v1724 = vcombine.low %v1612, %v1676
        %v1725 = vcombine.high %v1612, %v1676
        %v1727 = vunpack.c.l.s4 1983009808
        %v1728 = vunpack.c.0.s8 %v1727
        %v1729 = vlaneseq
        %v1730 = vshrl.u32 %v1729, 7
        %v1731 = vsub.s32 %v1728, %v1730
        %v1732 = vrot.slane %v1724, %v1731
        %v1734 = vunpack.c.l.s4 1983009808
        %v1735 = vunpack.c.0.s8 %v1734
        %v1736 = vlaneseq
        %v1737 = vshrl.u32 %v1736, 7
        %v1738 = vsub.s32 %v1735, %v1737
        %v1739 = vrot.slane %v1725, %v1738
        %v1740 = vcombine.low %v1644, %v1708
        %v1741 = vcombine.high %v1644, %v1708
        %v1743 = vunpack.c.l.s4 1983009808
        %v1744 = vunpack.c.0.s8 %v1743
        %v1745 = vlaneseq
        %v1746 = vshrl.u32 %v1745, 7
        %v1747 = vsub.s32 %v1744, %v1746
        %v1748 = vrot.slane %v1740, %v1747
        %v1750 = vunpack.c.l.s4 1983009808
        %v1751 = vunpack.c.0.s8 %v1750
        %v1752 = vlaneseq
        %v1753 = vshrl.u32 %v1752, 7
        %v1754 = vsub.s32 %v1751, %v1753
        %v1755 = vrot.slane %v1741, %v1754
        %v1756 = vcombine.low %v1732, %v1748
        %v1757 = vcombine.high %v1732, %v1748
        %v1759 = vunpack.c.l.s4 1934713408
        %v1760 = vunpack.c.0.s8 %v1759
        %v1761 = vlaneseq
        %v1762 = vshrl.u32 %v1761, 7
        %v1763 = vsub.s32 %v1760, %v1762
        %v1764 = vrot.slane %v1756, %v1763
        %v1766 = vunpack.c.l.s4 1934713408
        %v1767 = vunpack.c.0.s8 %v1766
        %v1768 = vlaneseq
        %v1769 = vshrl.u32 %v1768, 7
        %v1770 = vsub.s32 %v1767, %v1769
        %v1771 = vrot.slane %v1757, %v1770
        %v1772 = vcombine.low %v1739, %v1755
        %v1773 = vcombine.high %v1739, %v1755
        %v1775 = vunpack.c.l.s4 1934713408
        %v1776 = vunpack.c.0.s8 %v1775
        %v1777 = vlaneseq
        %v1778 = vshrl.u32 %v1777, 7
        %v1779 = vsub.s32 %v1776, %v1778
        %v1780 = vrot.slane %v1772, %v1779
        %v1782 = vunpack.c.l.s4 1934713408
        %v1783 = vunpack.c.0.s8 %v1782
        %v1784 = vlaneseq
        %v1785 = vshrl.u32 %v1784, 7
        %v1786 = vsub.s32 %v1783, %v1785
        %v1787 = vrot.slane %v1773, %v1786
        %v1788 = vcombine.high %v1764, 0.0
        %v1789 = vcombine.high %v1771, 0.0
        %v1790 = vcombine.high %v1780, 0.0
        %v1791 = vcombine.high %v1787, 0.0
        %v1792 = vcombine.low %v1764, %v1771
        %v1794 = vunpack.c.l.s4 1983009808
        %v1795 = vunpack.c.0.s8 %v1794
        %v1796 = vlaneseq
        %v1797 = vshrl.u32 %v1796, 7
        %v1798 = vsub.s32 %v1795, %v1797
        %v1799 = vrot.slane %v1792, %v1798
        %v1800 = vcombine.low %v1788, %v1789
        %v1802 = vunpack.c.l.s4 1983009808
        %v1803 = vunpack.c.0.s8 %v1802
        %v1804 = vlaneseq
        %v1805 = vshrl.u32 %v1804, 7
        %v1806 = vsub.s32 %v1803, %v1805
        %v1807 = vrot.slane %v1800, %v1806
        %v1808 = vcombine.low %v1780, %v1787
        %v1810 = vunpack.c.l.s4 1983009808
        %v1811 = vunpack.c.0.s8 %v1810
        %v1812 = vlaneseq
        %v1813 = vshrl.u32 %v1812, 7
        %v1814 = vsub.s32 %v1811, %v1813
        %v1815 = vrot.slane %v1808, %v1814
        %v1816 = vcombine.low %v1790, %v1791
        %v1818 = vunpack.c.l.s4 1983009808
        %v1819 = vunpack.c.0.s8 %v1818
        %v1820 = vlaneseq
        %v1821 = vshrl.u32 %v1820, 7
        %v1822 = vsub.s32 %v1819, %v1821
        %v1823 = vrot.slane %v1816, %v1822
        %v1824 = vcombine.low %v1799, %v1807
        %v1825 = vcombine.high %v1799, %v1807
        %v1827 = vunpack.c.l.s4 1934713408
        %v1828 = vunpack.c.0.s8 %v1827
        %v1829 = vlaneseq
        %v1830 = vshrl.u32 %v1829, 7
        %v1831 = vsub.s32 %v1828, %v1830
        %v1832 = vrot.slane %v1824, %v1831
        %v1834 = vunpack.c.l.s4 1934713408
        %v1835 = vunpack.c.0.s8 %v1834
        %v1836 = vlaneseq
        %v1837 = vshrl.u32 %v1836, 7
        %v1838 = vsub.s32 %v1835, %v1837
        %v1839 = vrot.slane %v1825, %v1838
        %v1840 = vcombine.low %v1815, %v1823
        %v1841 = vcombine.high %v1815, %v1823
        %v1843 = vunpack.c.l.s4 1934713408
        %v1844 = vunpack.c.0.s8 %v1843
        %v1845 = vlaneseq
        %v1846 = vshrl.u32 %v1845, 7
        %v1847 = vsub.s32 %v1844, %v1846
        %v1848 = vrot.slane %v1840, %v1847
        %v1850 = vunpack.c.l.s4 1934713408
        %v1851 = vunpack.c.0.s8 %v1850
        %v1852 = vlaneseq
        %v1853 = vshrl.u32 %v1852, 7
        %v1854 = vsub.s32 %v1851, %v1853
        %v1855 = vrot.slane %v1841, %v1854
        %v1856 = vcombine.low %v1832, %v1848
        %v1857 = vcombine.high %v1832, %v1848
        %v1858 = vcombine.low %v1839, %v1855
        %v1859 = vcombine.high %v1839, %v1855
        %1861 = vrot.lane.b32.xlu0 %v1857, 8
        %v1862 = vpop.permute.xlu0 %1861
        %1865 = vrot.lane.b32.xlu0 %v1858, 16
        %v1866 = vpop.permute.xlu0 %1865
        %1869 = vrot.lane.b32.xlu0 %v1859, 24
        %v1870 = vpop.permute.xlu0 %1869
        %v1872 = vsel %vm1099, %v1856, %v1862
        %v1873 = vsel %vm1299, %v1872, %v1866
        %vm1874 = vcmask 195584
        %v1875 = vsel %vm1874, %v1873, %v1870
        %v1876 = vpack.c.bf16 %v1875, %v1875
        %v1877 = vld [vmem:[%s9] sm:$0xf]
        %v1878 = vld [vmem:[%s9 + $0x4] sm:$0xf]
        %v1879 = vld [vmem:[%s9 + $0x8] sm:$0xf]
        %v1880 = vld [vmem:[%s9 + $0xc] sm:$0xf]
        %v1881 = vld [vmem:[#allocation15] sm:$0x1]
        %v1883 = vlaneseq
        %v1884 = vshrl.u32 %v1883, 7
        %v1885 = vsub.s32 0, %v1884
        %v1886 = vrot.slane %v1881, %v1885
        %v1892 = vunpack.c.l.b16 %v1877
        %v1893 = vunpack.c.l.b16 %v1878
        %v1894 = vunpack.c.l.b16 %v1879
        %v1895 = vunpack.c.l.b16 %v1880
        %v1896 = vpack.c.b16 %v1893, %v1892
        %v1897 = vpack.c.b16 %v1895, %v1894
        %v1901 = vsel %vm961, %v1876, 0
        %1903 = vmatprep.subr.bf16.mxu0 0
        %1904 = vmatpush1.bf16.msra.mxu0 %v1896
        %1905 = vmatprep.subr.bf16.mxu0 0
        %1906 = vmatpush1.bf16.msra.mxu0 %v1897
        %1907 = vmatprep.subr.bf16.mxu0 0
        %1908 = vmatpush1.bf16.msra.mxu0 0
        %1909 = vmatprep.subr.bf16.mxu0 0
        %1910 = vmatpush1.bf16.msra.mxu0 0
        %1911 = vmatprep.subr.bf16.mxu0 0
        %1912 = vmatpush1.bf16.msra.mxu0 0
        %1913 = vmatprep.subr.bf16.mxu0 0
        %1914 = vmatpush1.bf16.msra.mxu0 0
        %1915 = vmatprep.subr.bf16.mxu0 0
        %1916 = vmatpush1.bf16.msra.mxu0 0
        %1917 = vmatprep.subr.bf16.mxu0 0
        %1918 = vmatpush1.bf16.msra.mxu0 0
        %1919 = vmatprep.subr.bf16.mxu0 0
        %1920 = vmatpush1.bf16.msra.mxu0 0
        %1921 = vmatprep.subr.bf16.mxu0 0
        %1922 = vmatpush1.bf16.msra.mxu0 0
        %1923 = vmatprep.subr.bf16.mxu0 0
        %1924 = vmatpush1.bf16.msra.mxu0 0
        %1925 = vmatprep.subr.bf16.mxu0 0
        %1926 = vmatpush1.bf16.msra.mxu0 0
        %1927 = vmatprep.subr.bf16.mxu0 0
        %1928 = vmatpush1.bf16.msra.mxu0 0
        %1929 = vmatprep.subr.bf16.mxu0 0
        %1930 = vmatpush1.bf16.msra.mxu0 0
        %1931 = vmatprep.subr.bf16.mxu0 0
        %1932 = vmatpush1.bf16.msra.mxu0 0
        %1933 = vmatprep.subr.bf16.mxu0 0
        %1934 = vmatpush1.bf16.msra.mxu0 0
        %1935 = vmatprep.mubr.bf16.mxu0 0
        %1936 = vmatmul.mubr.bf16.gmra.mrb[0].mxu0 %v1901
        %v1937 = vpop.f32.mrb[0].mxu0
        %v1938 = vadd.f32 %v1886, %v1937
        %v1939 = vpop.f32.mrb[0].mxu0
        %v1940 = vpop.f32.mrb[0].mxu0
        %v1941 = vpop.f32.mrb[0].mxu0
        %1942 = vdwg.mxu0
        %v1943 = vadd.f32 %v1938, %v792
        %v1944 = vld [vmem:[#allocation16] sm:$0x1]
        %v1945 = vld [vmem:[#allocation18] sm:$0x1]
        %v1946 = vsel %vm961, %v1943, 0.0
        %1947 = vadd.xlane.f32.xlu0 %v1946
        %v1948 = vpop.xlane.xlu0 %1947
        %v1949 = vrcp.pop 32.0
        %v1950 = vmul.f32 %v1948, %v1949
        %v1951 = vsub.f32 %v1943, %v1950
        %v1952 = vmul.f32 %v1951, %v1951
        %v1953 = vsel %vm961, %v1952, 0.0
        %1954 = vadd.xlane.f32.xlu0 %v1953
        %v1955 = vpop.xlane.xlu0 %1954
        %v1956 = vmul.f32 %v1955, %v1949
        %v1957 = vadd.f32 %v1956, 1e-12
        %v1958 = vrsqrt.pop %v1957
        %v1959 = vmul.f32 %v1951, %v1958
        %v1961 = vlaneseq
        %v1962 = vshrl.u32 %v1961, 7
        %v1963 = vsub.s32 0, %v1962
        %v1964 = vrot.slane %v1944, %v1963
        %v1966 = vmul.f32 %v1959, %v1964
        %v1968 = vlaneseq
        %v1969 = vshrl.u32 %v1968, 7
        %v1970 = vsub.s32 0, %v1969
        %v1971 = vrot.slane %v1945, %v1970
        %v1973 = vadd.f32 %v1966, %v1971
        %v1974 = vpack.c.bf16 %v1973, %v1973
        %v1975 = vld [vmem:[%s13] sm:$0xf]
        %v1976 = vld [vmem:[%s13 + $0x4] sm:$0xf]
        %v1977 = vld [vmem:[%s13 + $0x8] sm:$0xf]
        %v1978 = vld [vmem:[%s13 + $0xc] sm:$0xf]
        %v1979 = vld [vmem:[%s14] sm:$0x1]
        %v1981 = vlaneseq
        %v1982 = vshrl.u32 %v1981, 7
        %v1983 = vsub.s32 0, %v1982
        %v1984 = vrot.slane %v1979, %v1983
        %v1990 = vunpack.c.l.b16 %v1975
        %v1991 = vunpack.c.l.b16 %v1976
        %v1992 = vunpack.c.l.b16 %v1977
        %v1993 = vunpack.c.l.b16 %v1978
        %v1994 = vpack.c.b16 %v1991, %v1990
        %v1995 = vpack.c.b16 %v1993, %v1992
        %v1999 = vsel %vm961, %v1974, 0
        %2001 = vmatprep.subr.bf16.mxu0 0
        %2002 = vmatpush1.bf16.msra.mxu0 %v1994
        %2003 = vmatprep.subr.bf16.mxu0 0
        %2004 = vmatpush1.bf16.msra.mxu0 %v1995
        %2005 = vmatprep.subr.bf16.mxu0 0
        %2006 = vmatpush1.bf16.msra.mxu0 0
        %2007 = vmatprep.subr.bf16.mxu0 0
        %2008 = vmatpush1.bf16.msra.mxu0 0
        %2009 = vmatprep.subr.bf16.mxu0 0
        %2010 = vmatpush1.bf16.msra.mxu0 0
        %2011 = vmatprep.subr.bf16.mxu0 0
        %2012 = vmatpush1.bf16.msra.mxu0 0
        %2013 = vmatprep.subr.bf16.mxu0 0
        %2014 = vmatpush1.bf16.msra.mxu0 0
        %2015 = vmatprep.subr.bf16.mxu0 0
        %2016 = vmatpush1.bf16.msra.mxu0 0
        %2017 = vmatprep.subr.bf16.mxu0 0
        %2018 = vmatpush1.bf16.msra.mxu0 0
        %2019 = vmatprep.subr.bf16.mxu0 0
        %2020 = vmatpush1.bf16.msra.mxu0 0
        %2021 = vmatprep.subr.bf16.mxu0 0
        %2022 = vmatpush1.bf16.msra.mxu0 0
        %2023 = vmatprep.subr.bf16.mxu0 0
        %2024 = vmatpush1.bf16.msra.mxu0 0
        %2025 = vmatprep.subr.bf16.mxu0 0
        %2026 = vmatpush1.bf16.msra.mxu0 0
        %2027 = vmatprep.subr.bf16.mxu0 0
        %2028 = vmatpush1.bf16.msra.mxu0 0
        %2029 = vmatprep.subr.bf16.mxu0 0
        %2030 = vmatpush1.bf16.msra.mxu0 0
        %2031 = vmatprep.subr.bf16.mxu0 0
        %2032 = vmatpush1.bf16.msra.mxu0 0
        %2033 = vmatprep.mubr.bf16.mxu0 0
        %2034 = vmatmul.mubr.bf16.gmra.mrb[0].mxu0 %v1999
        %v2035 = vpop.f32.mrb[0].mxu0
        %v2036 = vadd.f32 %v1984, %v2035
        %v2037 = vpop.f32.mrb[0].mxu0
        %v2038 = vpop.f32.mrb[0].mxu0
        %v2039 = vpop.f32.mrb[0].mxu0
        %2040 = vdwg.mxu0
        %v2041 = vmul.f32 %v2036, 0.5
        %v2042 = vrcp.pop 1.4142135
        %v2043 = vmul.f32 %v2036, %v2042
        %v2044 = verf.f32.pop %v2043
        %v2045 = vadd.f32 %v2044, 1.0
        %v2046 = vmul.f32 %v2041, %v2045
        %v2047 = vpack.c.bf16 %v2046, %v2046
        %v2048 = vld [vmem:[%s15] sm:$0xf]
        %v2049 = vld [vmem:[%s15 + $0x4] sm:$0xf]
        %v2050 = vld [vmem:[%s15 + $0x8] sm:$0xf]
        %v2051 = vld [vmem:[%s15 + $0xc] sm:$0xf]
        %v2052 = vld [vmem:[%s15 + $0x10] sm:$0xf]
        %v2053 = vld [vmem:[%s15 + $0x14] sm:$0xf]
        %v2054 = vld [vmem:[%s15 + $0x18] sm:$0xf]
        %v2055 = vld [vmem:[%s15 + $0x1c] sm:$0xf]
        %v2056 = vld [vmem:[%s16] sm:$0x1]
        %v2058 = vlaneseq
        %v2059 = vshrl.u32 %v2058, 7
        %v2060 = vsub.s32 0, %v2059
        %v2061 = vrot.slane %v2056, %v2060
        %v2071 = vunpack.c.l.b16 %v2048
        %v2072 = vunpack.c.l.b16 %v2049
        %v2073 = vunpack.c.l.b16 %v2050
        %v2074 = vunpack.c.l.b16 %v2051
        %v2075 = vunpack.c.l.b16 %v2052
        %v2076 = vunpack.c.l.b16 %v2053
        %v2077 = vunpack.c.l.b16 %v2054
        %v2078 = vunpack.c.l.b16 %v2055
        %v2079 = vpack.c.b16 %v2072, %v2071
        %v2080 = vpack.c.b16 %v2074, %v2073
        %v2081 = vpack.c.b16 %v2076, %v2075
        %v2082 = vpack.c.b16 %v2078, %v2077
        %vm2087 = vcmask 523264
        %v2089 = vsel %vm2087, %v2047, 0
        %2091 = vmatprep.subr.bf16.mxu0 0
        %2092 = vmatpush1.bf16.msra.mxu0 %v2079
        %2093 = vmatprep.subr.bf16.mxu0 0
        %2094 = vmatpush1.bf16.msra.mxu0 %v2080
        %2095 = vmatprep.subr.bf16.mxu0 0
        %2096 = vmatpush1.bf16.msra.mxu0 %v2081
        %2097 = vmatprep.subr.bf16.mxu0 0
        %2098 = vmatpush1.bf16.msra.mxu0 %v2082
        %2099 = vmatprep.subr.bf16.mxu0 0
        %2100 = vmatpush1.bf16.msra.mxu0 0
        %2101 = vmatprep.subr.bf16.mxu0 0
        %2102 = vmatpush1.bf16.msra.mxu0 0
        %2103 = vmatprep.subr.bf16.mxu0 0
        %2104 = vmatpush1.bf16.msra.mxu0 0
        %2105 = vmatprep.subr.bf16.mxu0 0
        %2106 = vmatpush1.bf16.msra.mxu0 0
        %2107 = vmatprep.subr.bf16.mxu0 0
        %2108 = vmatpush1.bf16.msra.mxu0 0
        %2109 = vmatprep.subr.bf16.mxu0 0
        %2110 = vmatpush1.bf16.msra.mxu0 0
        %2111 = vmatprep.subr.bf16.mxu0 0
        %2112 = vmatpush1.bf16.msra.mxu0 0
        %2113 = vmatprep.subr.bf16.mxu0 0
        %2114 = vmatpush1.bf16.msra.mxu0 0
        %2115 = vmatprep.subr.bf16.mxu0 0
        %2116 = vmatpush1.bf16.msra.mxu0 0
        %2117 = vmatprep.subr.bf16.mxu0 0
        %2118 = vmatpush1.bf16.msra.mxu0 0
        %2119 = vmatprep.subr.bf16.mxu0 0
        %2120 = vmatpush1.bf16.msra.mxu0 0
        %2121 = vmatprep.subr.bf16.mxu0 0
        %2122 = vmatpush1.bf16.msra.mxu0 0
        %2123 = vmatprep.mubr.bf16.mxu0 0
        %2124 = vmatmul.mubr.bf16.gmra.mrb[0].mxu0 %v2089
        %v2125 = vpop.f32.mrb[0].mxu0
        %v2126 = vadd.f32 %v2061, %v2125
        %v2127 = vpop.f32.mrb[0].mxu0
        %v2128 = vpop.f32.mrb[0].mxu0
        %v2129 = vpop.f32.mrb[0].mxu0
        %2130 = vdwg.mxu0
        %v2131 = vadd.f32 %v2126, %v1973
        %v2132 = vld [vmem:[%s17] sm:$0x1]
        %v2133 = vld [vmem:[%s18] sm:$0x1]
        %v2134 = vsel %vm961, %v2131, 0.0
        %2135 = vadd.xlane.f32.xlu0 %v2134
        %v2136 = vpop.xlane.xlu0 %2135
        %v2137 = vmul.f32 %v2136, %v1949
        %v2138 = vsub.f32 %v2131, %v2137
        %v2139 = vmul.f32 %v2138, %v2138
        %v2140 = vsel %vm961, %v2139, 0.0
        %2141 = vadd.xlane.f32.xlu0 %v2140
        %v2142 = vpop.xlane.xlu0 %2141
        %v2143 = vmul.f32 %v2142, %v1949
        %v2144 = vadd.f32 %v2143, 1e-12
        %v2145 = vrsqrt.pop %v2144
        %v2146 = vmul.f32 %v2138, %v2145
        %v2148 = vlaneseq
        %v2149 = vshrl.u32 %v2148, 7
        %v2150 = vsub.s32 0, %v2149
        %v2151 = vrot.slane %v2132, %v2150
        %v2153 = vmul.f32 %v2146, %v2151
        %v2155 = vlaneseq
        %v2156 = vshrl.u32 %v2155, 7
        %v2157 = vsub.s32 0, %v2156
        %v2158 = vrot.slane %v2133, %v2157
        %v2160 = vadd.f32 %v2153, %v2158
        %2161 = vst.msk [vmem:[%s782] sm:$0xff] %vm961, %v2160
        %s2162 = sand.u32 %s480, 1
        %s2163 = scalar_lea.sflag [#allocation6], %s2162
        %s2164 = sand.u32 %s480, 1
        %s2165 = smul.addr %s2164, 8
        %s2166 = scalar_lea.vmem [#allocation19], %s2165
        // Predicated region
        $region137: #{tpu_custom_call.1} parent=95 // pred_check
          %p2167 = pneg %p490
        $region138: #{tpu_custom_call.1} parent=95 // pred_check_branch
          %2169 = sbr.rel (%p2167) target = $region140
        $region139: #{tpu_custom_call.1} parent=95 // pred_region
          %s2171 = ssub.s32 128, 128
          %2172 = vsyncadd %s2163, %s2171
          %s2173 = smul.addr %s46, 2
          %s2174 = sadd.s32 %s47, %s2173
          %s2175 = smul.addr %s2174, 128
          %s2176 = scalar_lea.hbm %s19, %s2175
          %s2178 = sshll.u32 %s2166, 4
          %s2179 = int_to_ptr.vmem [resolvable:$true] %s2178
          %2181 = dma.vmem_to_hbm [thread:$0]  %s2179, 128, %s2176, %s2163
        $region140: #{tpu_custom_call.1} parent=95 // pred_fallthru
          _
      $region96: #{tpu_custom_call.1} parent=5 // pred_fallthru
        _
      %p2182 = scmp.le.s32.totalorder 2, %s37
      // Predicated region
      $region141: #{tpu_custom_call.1} parent=5 // pred_check
        %p2183 = pneg %p2182
      $region142: #{tpu_custom_call.1} parent=5 // pred_check_branch
        %2185 = sbr.rel (%p2183) target = $region144
      $region143: #{tpu_custom_call.1} parent=5 // pred_region
        %s2186 = ssub.s32 %s37, 2
        // Predicated region
        $region145: #{tpu_custom_call.1} parent=143 // pred_check
          %p2187 = pneg %p496
        $region146: #{tpu_custom_call.1} parent=143 // pred_check_branch
          %2189 = sbr.rel (%p2187) target = $region148
        $region147: #{tpu_custom_call.1} parent=143 // pred_region
          %s2190 = sand.u32 %s481, 1
          %s2191 = scalar_lea.sflag [#allocation6], %s2190
          %s2192 = sand.u32 %s481, 1
          %s2193 = smul.addr %s2192, 8
          %s2194 = scalar_lea.vmem [#allocation19], %s2193
          %2195 = dma.done %s2191, 128
        $region148: #{tpu_custom_call.1} parent=143 // pred_fallthru
          _
      $region144: #{tpu_custom_call.1} parent=5 // pred_fallthru
        _
    $region6: #{tpu_custom_call.1} parent=1 // loop_footer
      %s41 = sadd.s32 1, %s37
    $region7: #{tpu_custom_call.1} parent=1 // loop_footer_branch
      %36 = sbr.rel target = $region3
    $region8: #{tpu_custom_call.1} parent=1 // loop_exit
      _
    %2196 = vsyncpa [#allocation5], 1
    %s2197 = scalar_lea.sflag [#allocation5], 1
    %2198 = vsyncpa %s2197, 1
    %2199 = vsyncpa [#allocation8], 1
    %s2200 = scalar_lea.sflag [#allocation8], 1
    %2201 = vsyncpa %s2200, 1
    %2202 = vsyncpa [#allocation11], 1
    %2203 = vsyncpa [#allocation14], 1
    %2204 = vsyncpa [#allocation17], 1
    %2205 = vsyncpa [#allocation6], 1
    %s2206 = scalar_lea.sflag [#allocation6], 1
    %2207 = vsyncpa %s2206, 1

</llo_original>
